<compile_context>
chip_gen: v7x
topology: tpu7x:2x2x1
jax: 0.10.0
libtpu: 0.0.40
codegen_flags: <defaults>
</compile_context>

<pallas_src>
import jax
import jax.numpy as jnp
from jax import lax
from jax.experimental import pallas as pl
from jax.experimental.pallas import tpu as pltpu

INPUT_SIZE = 1
HIDDEN = 100
OUTPUT_SIZE = 1
HP = 128  # hidden padded to one full lane vector

# Gate permutation applied in the wrapper: PyTorch [i, f, g, o] -> [i, f, o, g]
# so the sigmoid gates are contiguous in lanes [0, 3*HP) and tanh gate in
# [3*HP, 4*HP).
GATE_PERM = (0, 1, 3, 2)


def _lstm_kernel(gin_ref, w_hh_ref, wl_ref, bl_ref, out_ref):
    """Runs the whole recurrence for one sequence, emits the final prediction.

    gin_ref : VMEM (S, 4*HP) f32   precomputed x_t*W_ih + (b_ih+b_hh), gate
                                   order [i, f, o, g]
    w_hh_ref: VMEM (HP, 4*HP) bf16 hidden->gate weights (transposed, reordered)
    wl_ref  : VMEM (1, HP) f32     linear head weight (padded)
    bl_ref  : SMEM (1,) f32        linear head bias
    out_ref : VMEM (1, 1) f32      prediction at the last timestep
    """
    seq_len = gin_ref.shape[0]

    h0 = jnp.zeros((1, HP), jnp.float32)
    c0 = jnp.zeros((1, HP), jnp.float32)

    def step(t, carry):
        h, c = carry
        # Recurrent matmul on the MXU (bf16 operands, f32 accumulation),
        # plus the precomputed input projection + bias.
        gates = (jnp.dot(h.astype(jnp.bfloat16), w_hh_ref[...],
                         preferred_element_type=jnp.float32)
                 + gin_ref[pl.ds(t, 1), :])                      # (1, 4*HP)

        # One wide sigmoid for [i | f | o], one tanh for [g] (2 EUP pushes).
        sig = jax.nn.sigmoid(gates[:, 0:3 * HP])                 # (1, 3*HP)
        g_g = jnp.tanh(gates[:, 3 * HP:4 * HP])                  # (1, HP)
        i_g = sig[:, 0 * HP:1 * HP]
        f_g = sig[:, 1 * HP:2 * HP]
        o_g = sig[:, 2 * HP:3 * HP]

        c_new = f_g * c + i_g * g_g
        h_new = o_g * jnp.tanh(c_new)
        return (h_new, c_new)

    h, _ = lax.fori_loop(0, seq_len, step, (h0, c0), unroll=True)

    # Linear head on the last hidden state (== predictions[-1]).
    pred = jnp.sum(h * wl_ref[...], axis=1, keepdims=True) + bl_ref[0]
    out_ref[...] = pred


def _pad_gate_rows_2d(w, h, hp, perm=GATE_PERM):
    """(4h, X) -> (4hp, X): zero-pad each gate block, re-order blocks by perm."""
    parts = [jnp.pad(w[g * h:(g + 1) * h], ((0, hp - h), (0, 0)))
             for g in perm]
    return jnp.concatenate(parts, axis=0)


def _pad_gate_rows_1d(b, h, hp, perm=GATE_PERM):
    parts = [jnp.pad(b[g * h:(g + 1) * h], (0, hp - h)) for g in perm]
    return jnp.concatenate(parts, axis=0)


@jax.jit
def lstm_forward(x, w_ih, w_hh, b_ih, b_hh, w_lin, b_lin):
    """x: (S,) f32.  Returns (1,) f32 — prediction at the last timestep."""
    h, hp = HIDDEN, HP
    x = x.astype(jnp.float32)

    # --- parameter plumbing (plain JAX glue) -------------------------------
    w_ih_row = _pad_gate_rows_2d(w_ih, h, hp)[:, 0]          # (4*HP,)
    b_all = _pad_gate_rows_1d(b_ih + b_hh, h, hp)            # (4*HP,)

    # Precompute per-timestep input projection + bias (embarrassingly parallel,
    # off the serial chain): gates_in[t] = x_t * W_ih + b.
    gates_in = x[:, None] * w_ih_row[None, :] + b_all[None, :]  # (S, 4*HP) f32

    w_hh_p = _pad_gate_rows_2d(w_hh, h, hp)                  # (4*HP, H)
    w_hh_p = jnp.pad(w_hh_p, ((0, 0), (0, hp - h)))          # (4*HP, HP)
    w_hh_t = w_hh_p.T.astype(jnp.bfloat16)                   # (HP, 4*HP) bf16

    wl = jnp.pad(w_lin, ((0, 0), (0, hp - h))).astype(jnp.float32)  # (1, HP)
    bl = b_lin.reshape(1).astype(jnp.float32)                       # (1,)

    out = pl.pallas_call(
        _lstm_kernel,
        out_shape=jax.ShapeDtypeStruct((1, 1), jnp.float32),
        in_specs=[
            pl.BlockSpec(memory_space=pltpu.MemorySpace.VMEM),  # gates_in
            pl.BlockSpec(memory_space=pltpu.MemorySpace.VMEM),  # w_hh_t
            pl.BlockSpec(memory_space=pltpu.MemorySpace.VMEM),  # wl
            pl.BlockSpec(memory_space=pltpu.MemorySpace.SMEM),  # bl
        ],
        out_specs=pl.BlockSpec(memory_space=pltpu.MemorySpace.VMEM),
    )(gates_in, w_hh_t, wl, bl)

    return out.reshape(1)  # matches predictions[-1] shape (1,)


def lstm_forward_ref(x, w_ih, w_hh, b_ih, b_hh, w_lin, b_lin):
    """Pure-JAX f32 reference mirroring torch.nn.LSTM + Linear (batch=1)."""
    h = jnp.zeros((HIDDEN,), jnp.float32)
    c = jnp.zeros((HIDDEN,), jnp.float32)

    def step(carry, x_t):
        h, c = carry
        gates = w_ih[:, 0] * x_t + w_hh @ h + b_ih + b_hh
        i_g = jax.nn.sigmoid(gates[0 * HIDDEN:1 * HIDDEN])
        f_g = jax.nn.sigmoid(gates[1 * HIDDEN:2 * HIDDEN])
        g_g = jnp.tanh(gates[2 * HIDDEN:3 * HIDDEN])
        o_g = jax.nn.sigmoid(gates[3 * HIDDEN:4 * HIDDEN])
        c = f_g * c + i_g * g_g
        h = o_g * jnp.tanh(c)
        return (h, c), None

    (h, c), _ = lax.scan(step, (h, c), x)
    return w_lin @ h + b_lin  # (1,)


if __name__ == "__main__":
    key = jax.random.PRNGKey(0)
    ks = jax.random.split(key, 7)

    seq_len = 8
    bound = 1.0 / jnp.sqrt(jnp.float32(HIDDEN))  # PyTorch-style uniform init

    x = jax.random.normal(ks[0], (seq_len,), jnp.float32)
    w_ih = jax.random.uniform(ks[1], (4 * HIDDEN, INPUT_SIZE), jnp.float32,
                              -bound, bound)
    w_hh = jax.random.uniform(ks[2], (4 * HIDDEN, HIDDEN), jnp.float32,
                              -bound, bound)
    b_ih = jax.random.uniform(ks[3], (4 * HIDDEN,), jnp.float32, -bound, bound)
    b_hh = jax.random.uniform(ks[4], (4 * HIDDEN,), jnp.float32, -bound, bound)
    w_lin = jax.random.uniform(ks[5], (OUTPUT_SIZE, HIDDEN), jnp.float32,
                               -bound, bound)
    b_lin = jax.random.uniform(ks[6], (OUTPUT_SIZE,), jnp.float32,
                               -bound, bound)

    out = lstm_forward(x, w_ih, w_hh, b_ih, b_hh, w_lin, b_lin)
    out = jax.block_until_ready(out)

    ref = lstm_forward_ref(x, w_ih, w_hh, b_ih, b_hh, w_lin, b_lin)
    assert out.shape == (1,), out.shape
    # bf16 MXU operands vs an f32 reference -> relaxed tolerance.
    assert jnp.allclose(out, ref, atol=1e-2, rtol=1e-2), (out, ref)

    print("KERNEL_OK")
</pallas_src>

<mosaic_0001>
module attributes {stable_mosaic.version = 11 : i64} {
  func.func @_lstm_kernel(%arg0: memref<8x512xf32, #tpu.memory_space<vmem>>, %arg1: memref<128x512xbf16, #tpu.memory_space<vmem>>, %arg2: memref<1x128xf32, #tpu.memory_space<vmem>>, %arg3: memref<1xf32, #tpu.memory_space<smem>>, %arg4: memref<1x1xf32, #tpu.memory_space<vmem>>) attributes {dimension_semantics = [], scalar_prefetch = 0 : i64, scratch_operands = 0 : i64, tpu.core_type = #tpu.core_type<tc>} {
    %cst = arith.constant 0.000000e+00 : f32
    %0 = vector.broadcast %cst : f32 to vector<1x128xf32>
    %cst_0 = arith.constant 0.000000e+00 : f32
    %1 = vector.broadcast %cst_0 : f32 to vector<1x128xf32>
    %c0_i32 = arith.constant 0 : i32
    %2 = arith.truncf %0 : vector<1x128xf32> to vector<1x128xbf16>
    %c0 = arith.constant 0 : index
    %c0_1 = arith.constant 0 : index
    %3 = vector.load %arg1[%c0, %c0_1] : memref<128x512xbf16, #tpu.memory_space<vmem>>, vector<128x512xbf16>
    %cst_2 = arith.constant dense<0.000000e+00> : vector<1x512xf32>
    %4 = tpu.matmul %2, %3, %cst_2 {dimension_numbers = #tpu.dot_dimension_numbers<[1], [0], [0], [1], [0, 0, 1, 1], [], []>} : vector<1x128xbf16>, vector<128x512xbf16>, vector<1x512xf32> -> vector<1x512xf32>
    %5 = arith.index_cast %c0_i32 : i32 to index
    %c0_3 = arith.constant 0 : index
    %6 = vector.load %arg0[%5, %c0_3] : memref<8x512xf32, #tpu.memory_space<vmem>>, vector<1x512xf32>
    %7 = arith.addf %4, %6 : vector<1x512xf32>
    %8 = vector.extract_strided_slice %7 {offsets = [0, 0], sizes = [1, 384], strides = [1, 1]} : vector<1x512xf32> to vector<1x384xf32>
    %9 = arith.negf %8 : vector<1x384xf32>
    %10 = math.exp %9 : vector<1x384xf32>
    %cst_4 = arith.constant 1.000000e+00 : f32
    %11 = vector.broadcast %cst_4 : f32 to vector<1x384xf32>
    %12 = arith.addf %11, %10 : vector<1x384xf32>
    %13 = arith.divf %11, %12 : vector<1x384xf32>
    %14 = vector.extract_strided_slice %7 {offsets = [0, 384], sizes = [1, 128], strides = [1, 1]} : vector<1x512xf32> to vector<1x128xf32>
    %15 = math.tanh %14 : vector<1x128xf32>
    %16 = vector.extract_strided_slice %13 {offsets = [0, 0], sizes = [1, 128], strides = [1, 1]} : vector<1x384xf32> to vector<1x128xf32>
    %17 = vector.extract_strided_slice %13 {offsets = [0, 128], sizes = [1, 128], strides = [1, 1]} : vector<1x384xf32> to vector<1x128xf32>
    %18 = vector.extract_strided_slice %13 {offsets = [0, 256], sizes = [1, 128], strides = [1, 1]} : vector<1x384xf32> to vector<1x128xf32>
    %19 = arith.mulf %17, %1 : vector<1x128xf32>
    %20 = arith.mulf %16, %15 : vector<1x128xf32>
    %21 = arith.addf %19, %20 : vector<1x128xf32>
    %22 = math.tanh %21 : vector<1x128xf32>
    %23 = arith.mulf %18, %22 : vector<1x128xf32>
    %c1_i32 = arith.constant 1 : i32
    %24 = arith.truncf %23 : vector<1x128xf32> to vector<1x128xbf16>
    %c0_5 = arith.constant 0 : index
    %c0_6 = arith.constant 0 : index
    %25 = vector.load %arg1[%c0_5, %c0_6] : memref<128x512xbf16, #tpu.memory_space<vmem>>, vector<128x512xbf16>
    %cst_7 = arith.constant dense<0.000000e+00> : vector<1x512xf32>
    %26 = tpu.matmul %24, %25, %cst_7 {dimension_numbers = #tpu.dot_dimension_numbers<[1], [0], [0], [1], [0, 0, 1, 1], [], []>} : vector<1x128xbf16>, vector<128x512xbf16>, vector<1x512xf32> -> vector<1x512xf32>
    %27 = arith.index_cast %c1_i32 : i32 to index
    %c0_8 = arith.constant 0 : index
    %28 = vector.load %arg0[%27, %c0_8] : memref<8x512xf32, #tpu.memory_space<vmem>>, vector<1x512xf32>
    %29 = arith.addf %26, %28 : vector<1x512xf32>
    %30 = vector.extract_strided_slice %29 {offsets = [0, 0], sizes = [1, 384], strides = [1, 1]} : vector<1x512xf32> to vector<1x384xf32>
    %31 = arith.negf %30 : vector<1x384xf32>
    %32 = math.exp %31 : vector<1x384xf32>
    %cst_9 = arith.constant 1.000000e+00 : f32
    %33 = vector.broadcast %cst_9 : f32 to vector<1x384xf32>
    %34 = arith.addf %33, %32 : vector<1x384xf32>
    %35 = arith.divf %33, %34 : vector<1x384xf32>
    %36 = vector.extract_strided_slice %29 {offsets = [0, 384], sizes = [1, 128], strides = [1, 1]} : vector<1x512xf32> to vector<1x128xf32>
    %37 = math.tanh %36 : vector<1x128xf32>
    %38 = vector.extract_strided_slice %35 {offsets = [0, 0], sizes = [1, 128], strides = [1, 1]} : vector<1x384xf32> to vector<1x128xf32>
    %39 = vector.extract_strided_slice %35 {offsets = [0, 128], sizes = [1, 128], strides = [1, 1]} : vector<1x384xf32> to vector<1x128xf32>
    %40 = vector.extract_strided_slice %35 {offsets = [0, 256], sizes = [1, 128], strides = [1, 1]} : vector<1x384xf32> to vector<1x128xf32>
    %41 = arith.mulf %39, %21 : vector<1x128xf32>
    %42 = arith.mulf %38, %37 : vector<1x128xf32>
    %43 = arith.addf %41, %42 : vector<1x128xf32>
    %44 = math.tanh %43 : vector<1x128xf32>
    %45 = arith.mulf %40, %44 : vector<1x128xf32>
    %c2_i32 = arith.constant 2 : i32
    %46 = arith.truncf %45 : vector<1x128xf32> to vector<1x128xbf16>
    %c0_10 = arith.constant 0 : index
    %c0_11 = arith.constant 0 : index
    %47 = vector.load %arg1[%c0_10, %c0_11] : memref<128x512xbf16, #tpu.memory_space<vmem>>, vector<128x512xbf16>
    %cst_12 = arith.constant dense<0.000000e+00> : vector<1x512xf32>
    %48 = tpu.matmul %46, %47, %cst_12 {dimension_numbers = #tpu.dot_dimension_numbers<[1], [0], [0], [1], [0, 0, 1, 1], [], []>} : vector<1x128xbf16>, vector<128x512xbf16>, vector<1x512xf32> -> vector<1x512xf32>
    %49 = arith.index_cast %c2_i32 : i32 to index
    %c0_13 = arith.constant 0 : index
    %50 = vector.load %arg0[%49, %c0_13] : memref<8x512xf32, #tpu.memory_space<vmem>>, vector<1x512xf32>
    %51 = arith.addf %48, %50 : vector<1x512xf32>
    %52 = vector.extract_strided_slice %51 {offsets = [0, 0], sizes = [1, 384], strides = [1, 1]} : vector<1x512xf32> to vector<1x384xf32>
    %53 = arith.negf %52 : vector<1x384xf32>
    %54 = math.exp %53 : vector<1x384xf32>
    %cst_14 = arith.constant 1.000000e+00 : f32
    %55 = vector.broadcast %cst_14 : f32 to vector<1x384xf32>
    %56 = arith.addf %55, %54 : vector<1x384xf32>
    %57 = arith.divf %55, %56 : vector<1x384xf32>
    %58 = vector.extract_strided_slice %51 {offsets = [0, 384], sizes = [1, 128], strides = [1, 1]} : vector<1x512xf32> to vector<1x128xf32>
    %59 = math.tanh %58 : vector<1x128xf32>
    %60 = vector.extract_strided_slice %57 {offsets = [0, 0], sizes = [1, 128], strides = [1, 1]} : vector<1x384xf32> to vector<1x128xf32>
    %61 = vector.extract_strided_slice %57 {offsets = [0, 128], sizes = [1, 128], strides = [1, 1]} : vector<1x384xf32> to vector<1x128xf32>
    %62 = vector.extract_strided_slice %57 {offsets = [0, 256], sizes = [1, 128], strides = [1, 1]} : vector<1x384xf32> to vector<1x128xf32>
    %63 = arith.mulf %61, %43 : vector<1x128xf32>
    %64 = arith.mulf %60, %59 : vector<1x128xf32>
    %65 = arith.addf %63, %64 : vector<1x128xf32>
    %66 = math.tanh %65 : vector<1x128xf32>
    %67 = arith.mulf %62, %66 : vector<1x128xf32>
    %c3_i32 = arith.constant 3 : i32
    %68 = arith.truncf %67 : vector<1x128xf32> to vector<1x128xbf16>
    %c0_15 = arith.constant 0 : index
    %c0_16 = arith.constant 0 : index
    %69 = vector.load %arg1[%c0_15, %c0_16] : memref<128x512xbf16, #tpu.memory_space<vmem>>, vector<128x512xbf16>
    %cst_17 = arith.constant dense<0.000000e+00> : vector<1x512xf32>
    %70 = tpu.matmul %68, %69, %cst_17 {dimension_numbers = #tpu.dot_dimension_numbers<[1], [0], [0], [1], [0, 0, 1, 1], [], []>} : vector<1x128xbf16>, vector<128x512xbf16>, vector<1x512xf32> -> vector<1x512xf32>
    %71 = arith.index_cast %c3_i32 : i32 to index
    %c0_18 = arith.constant 0 : index
    %72 = vector.load %arg0[%71, %c0_18] : memref<8x512xf32, #tpu.memory_space<vmem>>, vector<1x512xf32>
    %73 = arith.addf %70, %72 : vector<1x512xf32>
    %74 = vector.extract_strided_slice %73 {offsets = [0, 0], sizes = [1, 384], strides = [1, 1]} : vector<1x512xf32> to vector<1x384xf32>
    %75 = arith.negf %74 : vector<1x384xf32>
    %76 = math.exp %75 : vector<1x384xf32>
    %cst_19 = arith.constant 1.000000e+00 : f32
    %77 = vector.broadcast %cst_19 : f32 to vector<1x384xf32>
    %78 = arith.addf %77, %76 : vector<1x384xf32>
    %79 = arith.divf %77, %78 : vector<1x384xf32>
    %80 = vector.extract_strided_slice %73 {offsets = [0, 384], sizes = [1, 128], strides = [1, 1]} : vector<1x512xf32> to vector<1x128xf32>
    %81 = math.tanh %80 : vector<1x128xf32>
    %82 = vector.extract_strided_slice %79 {offsets = [0, 0], sizes = [1, 128], strides = [1, 1]} : vector<1x384xf32> to vector<1x128xf32>
    %83 = vector.extract_strided_slice %79 {offsets = [0, 128], sizes = [1, 128], strides = [1, 1]} : vector<1x384xf32> to vector<1x128xf32>
    %84 = vector.extract_strided_slice %79 {offsets = [0, 256], sizes = [1, 128], strides = [1, 1]} : vector<1x384xf32> to vector<1x128xf32>
    %85 = arith.mulf %83, %65 : vector<1x128xf32>
    %86 = arith.mulf %82, %81 : vector<1x128xf32>
    %87 = arith.addf %85, %86 : vector<1x128xf32>
    %88 = math.tanh %87 : vector<1x128xf32>
    %89 = arith.mulf %84, %88 : vector<1x128xf32>
    %c4_i32 = arith.constant 4 : i32
    %90 = arith.truncf %89 : vector<1x128xf32> to vector<1x128xbf16>
    %c0_20 = arith.constant 0 : index
    %c0_21 = arith.constant 0 : index
    %91 = vector.load %arg1[%c0_20, %c0_21] : memref<128x512xbf16, #tpu.memory_space<vmem>>, vector<128x512xbf16>
    %cst_22 = arith.constant dense<0.000000e+00> : vector<1x512xf32>
    %92 = tpu.matmul %90, %91, %cst_22 {dimension_numbers = #tpu.dot_dimension_numbers<[1], [0], [0], [1], [0, 0, 1, 1], [], []>} : vector<1x128xbf16>, vector<128x512xbf16>, vector<1x512xf32> -> vector<1x512xf32>
    %93 = arith.index_cast %c4_i32 : i32 to index
    %c0_23 = arith.constant 0 : index
    %94 = vector.load %arg0[%93, %c0_23] : memref<8x512xf32, #tpu.memory_space<vmem>>, vector<1x512xf32>
    %95 = arith.addf %92, %94 : vector<1x512xf32>
    %96 = vector.extract_strided_slice %95 {offsets = [0, 0], sizes = [1, 384], strides = [1, 1]} : vector<1x512xf32> to vector<1x384xf32>
    %97 = arith.negf %96 : vector<1x384xf32>
    %98 = math.exp %97 : vector<1x384xf32>
    %cst_24 = arith.constant 1.000000e+00 : f32
    %99 = vector.broadcast %cst_24 : f32 to vector<1x384xf32>
    %100 = arith.addf %99, %98 : vector<1x384xf32>
    %101 = arith.divf %99, %100 : vector<1x384xf32>
    %102 = vector.extract_strided_slice %95 {offsets = [0, 384], sizes = [1, 128], strides = [1, 1]} : vector<1x512xf32> to vector<1x128xf32>
    %103 = math.tanh %102 : vector<1x128xf32>
    %104 = vector.extract_strided_slice %101 {offsets = [0, 0], sizes = [1, 128], strides = [1, 1]} : vector<1x384xf32> to vector<1x128xf32>
    %105 = vector.extract_strided_slice %101 {offsets = [0, 128], sizes = [1, 128], strides = [1, 1]} : vector<1x384xf32> to vector<1x128xf32>
    %106 = vector.extract_strided_slice %101 {offsets = [0, 256], sizes = [1, 128], strides = [1, 1]} : vector<1x384xf32> to vector<1x128xf32>
    %107 = arith.mulf %105, %87 : vector<1x128xf32>
    %108 = arith.mulf %104, %103 : vector<1x128xf32>
    %109 = arith.addf %107, %108 : vector<1x128xf32>
    %110 = math.tanh %109 : vector<1x128xf32>
    %111 = arith.mulf %106, %110 : vector<1x128xf32>
    %c5_i32 = arith.constant 5 : i32
    %112 = arith.truncf %111 : vector<1x128xf32> to vector<1x128xbf16>
    %c0_25 = arith.constant 0 : index
    %c0_26 = arith.constant 0 : index
    %113 = vector.load %arg1[%c0_25, %c0_26] : memref<128x512xbf16, #tpu.memory_space<vmem>>, vector<128x512xbf16>
    %cst_27 = arith.constant dense<0.000000e+00> : vector<1x512xf32>
    %114 = tpu.matmul %112, %113, %cst_27 {dimension_numbers = #tpu.dot_dimension_numbers<[1], [0], [0], [1], [0, 0, 1, 1], [], []>} : vector<1x128xbf16>, vector<128x512xbf16>, vector<1x512xf32> -> vector<1x512xf32>
    %115 = arith.index_cast %c5_i32 : i32 to index
    %c0_28 = arith.constant 0 : index
    %116 = vector.load %arg0[%115, %c0_28] : memref<8x512xf32, #tpu.memory_space<vmem>>, vector<1x512xf32>
    %117 = arith.addf %114, %116 : vector<1x512xf32>
    %118 = vector.extract_strided_slice %117 {offsets = [0, 0], sizes = [1, 384], strides = [1, 1]} : vector<1x512xf32> to vector<1x384xf32>
    %119 = arith.negf %118 : vector<1x384xf32>
    %120 = math.exp %119 : vector<1x384xf32>
    %cst_29 = arith.constant 1.000000e+00 : f32
    %121 = vector.broadcast %cst_29 : f32 to vector<1x384xf32>
    %122 = arith.addf %121, %120 : vector<1x384xf32>
    %123 = arith.divf %121, %122 : vector<1x384xf32>
    %124 = vector.extract_strided_slice %117 {offsets = [0, 384], sizes = [1, 128], strides = [1, 1]} : vector<1x512xf32> to vector<1x128xf32>
    %125 = math.tanh %124 : vector<1x128xf32>
    %126 = vector.extract_strided_slice %123 {offsets = [0, 0], sizes = [1, 128], strides = [1, 1]} : vector<1x384xf32> to vector<1x128xf32>
    %127 = vector.extract_strided_slice %123 {offsets = [0, 128], sizes = [1, 128], strides = [1, 1]} : vector<1x384xf32> to vector<1x128xf32>
    %128 = vector.extract_strided_slice %123 {offsets = [0, 256], sizes = [1, 128], strides = [1, 1]} : vector<1x384xf32> to vector<1x128xf32>
    %129 = arith.mulf %127, %109 : vector<1x128xf32>
    %130 = arith.mulf %126, %125 : vector<1x128xf32>
    %131 = arith.addf %129, %130 : vector<1x128xf32>
    %132 = math.tanh %131 : vector<1x128xf32>
    %133 = arith.mulf %128, %132 : vector<1x128xf32>
    %c6_i32 = arith.constant 6 : i32
    %134 = arith.truncf %133 : vector<1x128xf32> to vector<1x128xbf16>
    %c0_30 = arith.constant 0 : index
    %c0_31 = arith.constant 0 : index
    %135 = vector.load %arg1[%c0_30, %c0_31] : memref<128x512xbf16, #tpu.memory_space<vmem>>, vector<128x512xbf16>
    %cst_32 = arith.constant dense<0.000000e+00> : vector<1x512xf32>
    %136 = tpu.matmul %134, %135, %cst_32 {dimension_numbers = #tpu.dot_dimension_numbers<[1], [0], [0], [1], [0, 0, 1, 1], [], []>} : vector<1x128xbf16>, vector<128x512xbf16>, vector<1x512xf32> -> vector<1x512xf32>
    %137 = arith.index_cast %c6_i32 : i32 to index
    %c0_33 = arith.constant 0 : index
    %138 = vector.load %arg0[%137, %c0_33] : memref<8x512xf32, #tpu.memory_space<vmem>>, vector<1x512xf32>
    %139 = arith.addf %136, %138 : vector<1x512xf32>
    %140 = vector.extract_strided_slice %139 {offsets = [0, 0], sizes = [1, 384], strides = [1, 1]} : vector<1x512xf32> to vector<1x384xf32>
    %141 = arith.negf %140 : vector<1x384xf32>
    %142 = math.exp %141 : vector<1x384xf32>
    %cst_34 = arith.constant 1.000000e+00 : f32
    %143 = vector.broadcast %cst_34 : f32 to vector<1x384xf32>
    %144 = arith.addf %143, %142 : vector<1x384xf32>
    %145 = arith.divf %143, %144 : vector<1x384xf32>
    %146 = vector.extract_strided_slice %139 {offsets = [0, 384], sizes = [1, 128], strides = [1, 1]} : vector<1x512xf32> to vector<1x128xf32>
    %147 = math.tanh %146 : vector<1x128xf32>
    %148 = vector.extract_strided_slice %145 {offsets = [0, 0], sizes = [1, 128], strides = [1, 1]} : vector<1x384xf32> to vector<1x128xf32>
    %149 = vector.extract_strided_slice %145 {offsets = [0, 128], sizes = [1, 128], strides = [1, 1]} : vector<1x384xf32> to vector<1x128xf32>
    %150 = vector.extract_strided_slice %145 {offsets = [0, 256], sizes = [1, 128], strides = [1, 1]} : vector<1x384xf32> to vector<1x128xf32>
    %151 = arith.mulf %149, %131 : vector<1x128xf32>
    %152 = arith.mulf %148, %147 : vector<1x128xf32>
    %153 = arith.addf %151, %152 : vector<1x128xf32>
    %154 = math.tanh %153 : vector<1x128xf32>
    %155 = arith.mulf %150, %154 : vector<1x128xf32>
    %c7_i32 = arith.constant 7 : i32
    %156 = arith.truncf %155 : vector<1x128xf32> to vector<1x128xbf16>
    %c0_35 = arith.constant 0 : index
    %c0_36 = arith.constant 0 : index
    %157 = vector.load %arg1[%c0_35, %c0_36] : memref<128x512xbf16, #tpu.memory_space<vmem>>, vector<128x512xbf16>
    %cst_37 = arith.constant dense<0.000000e+00> : vector<1x512xf32>
    %158 = tpu.matmul %156, %157, %cst_37 {dimension_numbers = #tpu.dot_dimension_numbers<[1], [0], [0], [1], [0, 0, 1, 1], [], []>} : vector<1x128xbf16>, vector<128x512xbf16>, vector<1x512xf32> -> vector<1x512xf32>
    %159 = arith.index_cast %c7_i32 : i32 to index
    %c0_38 = arith.constant 0 : index
    %160 = vector.load %arg0[%159, %c0_38] : memref<8x512xf32, #tpu.memory_space<vmem>>, vector<1x512xf32>
    %161 = arith.addf %158, %160 : vector<1x512xf32>
    %162 = vector.extract_strided_slice %161 {offsets = [0, 0], sizes = [1, 384], strides = [1, 1]} : vector<1x512xf32> to vector<1x384xf32>
    %163 = arith.negf %162 : vector<1x384xf32>
    %164 = math.exp %163 : vector<1x384xf32>
    %cst_39 = arith.constant 1.000000e+00 : f32
    %165 = vector.broadcast %cst_39 : f32 to vector<1x384xf32>
    %166 = arith.addf %165, %164 : vector<1x384xf32>
    %167 = arith.divf %165, %166 : vector<1x384xf32>
    %168 = vector.extract_strided_slice %161 {offsets = [0, 384], sizes = [1, 128], strides = [1, 1]} : vector<1x512xf32> to vector<1x128xf32>
    %169 = math.tanh %168 : vector<1x128xf32>
    %170 = vector.extract_strided_slice %167 {offsets = [0, 0], sizes = [1, 128], strides = [1, 1]} : vector<1x384xf32> to vector<1x128xf32>
    %171 = vector.extract_strided_slice %167 {offsets = [0, 128], sizes = [1, 128], strides = [1, 1]} : vector<1x384xf32> to vector<1x128xf32>
    %172 = vector.extract_strided_slice %167 {offsets = [0, 256], sizes = [1, 128], strides = [1, 1]} : vector<1x384xf32> to vector<1x128xf32>
    %173 = arith.mulf %171, %153 : vector<1x128xf32>
    %174 = arith.mulf %170, %169 : vector<1x128xf32>
    %175 = arith.addf %173, %174 : vector<1x128xf32>
    %176 = math.tanh %175 : vector<1x128xf32>
    %177 = arith.mulf %172, %176 : vector<1x128xf32>
    %c8_i32 = arith.constant 8 : i32
    %c0_40 = arith.constant 0 : index
    %c0_41 = arith.constant 0 : index
    %178 = vector.load %arg2[%c0_40, %c0_41] : memref<1x128xf32, #tpu.memory_space<vmem>>, vector<1x128xf32>
    %179 = arith.mulf %177, %178 : vector<1x128xf32>
    %cst_42 = arith.constant dense<0.000000e+00> : vector<1xf32>
    %180 = vector.multi_reduction <add>, %179, %cst_42 [1] : vector<1x128xf32> to vector<1xf32>
    %181 = vector.shape_cast %180 : vector<1xf32> to vector<1x1xf32>
    %c0_43 = arith.constant 0 : index
    %182 = memref.load %arg3[%c0_43] : memref<1xf32, #tpu.memory_space<smem>>
    %183 = vector.broadcast %182 : f32 to vector<1x1xf32>
    %184 = arith.addf %181, %183 : vector<1x1xf32>
    %c0_44 = arith.constant 0 : index
    %c0_45 = arith.constant 0 : index
    %185 = vector.load %arg4[%c0_44, %c0_45] : memref<1x1xf32, #tpu.memory_space<vmem>>, vector<1x1xf32>
    tpu.vector_store %arg4[%c0_44, %c0_45], %184 {strides = array<i32>} : memref<1x1xf32, #tpu.memory_space<vmem>>, vector<1x1xf32>,
    return
  }
}

</mosaic_0001>

<llo_original>
// kernel: lstm_forward.1
$region0: #{lstm_forward.1}
  #allocation0 [shape = 'u32[]', space=smem, size = 0x4, offset = 0x4, fixed_abs, tag = 'smem constant byte address 0x4 - core index']
  #allocation1 [shape = 'u32[144,128]{1,0:T(1,128)}', space=vmem, size = 0x12000, scoped, tag = 'internal scratch']
  #allocation2 [shape = 'f32[1]{0:T(128)S(6)}', space=smem, size = 0x200, scoped, tag = 'scoped memory for lstm_forward.1']
  %s0 = inlined_call_operand.vmem [shape: f32[8,512], index: 0, kind: input, shape index: {}]
  %s1 = inlined_call_operand.vmem [shape: bf16[128,512], index: 1, kind: input, shape index: {}]
  %s2 = inlined_call_operand.vmem [shape: f32[1,128], index: 2, kind: input, shape index: {}]
  %s3 = inlined_call_operand.<no memory space> [shape: f32[1], index: 3, kind: input, shape index: {}]
  %s4 = inlined_call_operand.hbm [shape: f32[1,1], index: 4, kind: output, shape index: {}]
  %s5 = sld [smem:[#allocation0]]
  $region26: #{lstm_forward.1} parent=0
    _
  %s7 = ssub.s32 1, %s5
  %s8 = scalar_select 0, %s7, %s5
  %9 = sst [smem:[#allocation2]] %s3
  $region1: #{lstm_forward.1} parent=0
    #allocation3 [shape = 'u8[512]{0}', space=vmem, size = 0x400, scoped, tag = 'output window, operand 0, single buffered']
    #allocation4 [shape = 's32[1]{0}', space=sflag, size = 0x4, scoped, tag = 'scoped memory for lstm_forward.1']
    %10 = vsyncpa [#allocation4], 0
    // Predicated region
    $region2: #{lstm_forward.1} parent=1 // pred_check
      _
    $region3: #{lstm_forward.1} parent=1 // pred_check_branch
      %12 = sbr.rel (0) target = $region5
    $region4: #{lstm_forward.1} parent=1 // pred_region
      _
    $region5: #{lstm_forward.1} parent=1 // pred_fallthru
      _
    // Predicated region
    $region6: #{lstm_forward.1} parent=1 // pred_check
      _
    $region7: #{lstm_forward.1} parent=1 // pred_check_branch
      %14 = sbr.rel (0) target = $region9
    $region8: #{lstm_forward.1} parent=1 // pred_region
      _
    $region9: #{lstm_forward.1} parent=1 // pred_fallthru
      _
    // Predicated region
    $region10: #{lstm_forward.1} parent=1 // pred_check
      _
    $region11: #{lstm_forward.1} parent=1 // pred_check_branch
      %16 = sbr.rel (0) target = $region13
    $region12: #{lstm_forward.1} parent=1 // pred_region
      _
    $region13: #{lstm_forward.1} parent=1 // pred_fallthru
      _
    // Predicated region
    $region14: #{lstm_forward.1} parent=1 // pred_check
      _
    $region15: #{lstm_forward.1} parent=1 // pred_check_branch
      %18 = sbr.rel (0) target = $region17
    $region16: #{lstm_forward.1} parent=1 // pred_region
      _
    $region17: #{lstm_forward.1} parent=1 // pred_fallthru
      _
    %v20 = vld [vmem:[%s1] sm:$0xff]
    %v21 = vld [vmem:[%s1 + $0x8] sm:$0xff]
    %v22 = vld [vmem:[%s1 + $0x10] sm:$0xff]
    %v23 = vld [vmem:[%s1 + $0x18] sm:$0xff]
    %v24 = vld [vmem:[%s1 + $0x20] sm:$0xff]
    %v25 = vld [vmem:[%s1 + $0x28] sm:$0xff]
    %v26 = vld [vmem:[%s1 + $0x30] sm:$0xff]
    %v27 = vld [vmem:[%s1 + $0x38] sm:$0xff]
    %v28 = vld [vmem:[%s1 + $0x40] sm:$0xff]
    %v29 = vld [vmem:[%s1 + $0x48] sm:$0xff]
    %v30 = vld [vmem:[%s1 + $0x50] sm:$0xff]
    %v31 = vld [vmem:[%s1 + $0x58] sm:$0xff]
    %v32 = vld [vmem:[%s1 + $0x60] sm:$0xff]
    %v33 = vld [vmem:[%s1 + $0x68] sm:$0xff]
    %v34 = vld [vmem:[%s1 + $0x70] sm:$0xff]
    %v35 = vld [vmem:[%s1 + $0x78] sm:$0xff]
    %v36 = vld [vmem:[%s1 + $0x80] sm:$0xff]
    %v37 = vld [vmem:[%s1 + $0x88] sm:$0xff]
    %v38 = vld [vmem:[%s1 + $0x90] sm:$0xff]
    %v39 = vld [vmem:[%s1 + $0x98] sm:$0xff]
    %v40 = vld [vmem:[%s1 + $0xa0] sm:$0xff]
    %v41 = vld [vmem:[%s1 + $0xa8] sm:$0xff]
    %v42 = vld [vmem:[%s1 + $0xb0] sm:$0xff]
    %v43 = vld [vmem:[%s1 + $0xb8] sm:$0xff]
    %v44 = vld [vmem:[%s1 + $0xc0] sm:$0xff]
    %v45 = vld [vmem:[%s1 + $0xc8] sm:$0xff]
    %v46 = vld [vmem:[%s1 + $0xd0] sm:$0xff]
    %v47 = vld [vmem:[%s1 + $0xd8] sm:$0xff]
    %v48 = vld [vmem:[%s1 + $0xe0] sm:$0xff]
    %v49 = vld [vmem:[%s1 + $0xe8] sm:$0xff]
    %v50 = vld [vmem:[%s1 + $0xf0] sm:$0xff]
    %v51 = vld [vmem:[%s1 + $0xf8] sm:$0xff]
    %v52 = vld [vmem:[%s0] ss:$8 sm:$0xf]
    %v85 = vunpack.c.l.b16 %v20
    %v86 = vunpack.c.h.b16 %v20
    %v87 = vunpack.c.l.b16 %v21
    %v88 = vunpack.c.h.b16 %v21
    %v89 = vunpack.c.l.b16 %v22
    %v90 = vunpack.c.h.b16 %v22
    %v91 = vunpack.c.l.b16 %v23
    %v92 = vunpack.c.h.b16 %v23
    %v93 = vunpack.c.l.b16 %v24
    %v94 = vunpack.c.h.b16 %v24
    %v95 = vunpack.c.l.b16 %v25
    %v96 = vunpack.c.h.b16 %v25
    %v97 = vunpack.c.l.b16 %v26
    %v98 = vunpack.c.h.b16 %v26
    %v99 = vunpack.c.l.b16 %v27
    %v100 = vunpack.c.h.b16 %v27
    %v101 = vunpack.c.l.b16 %v28
    %v102 = vunpack.c.h.b16 %v28
    %v103 = vunpack.c.l.b16 %v29
    %v104 = vunpack.c.h.b16 %v29
    %v105 = vunpack.c.l.b16 %v30
    %v106 = vunpack.c.h.b16 %v30
    %v107 = vunpack.c.l.b16 %v31
    %v108 = vunpack.c.h.b16 %v31
    %v109 = vunpack.c.l.b16 %v32
    %v110 = vunpack.c.h.b16 %v32
    %v111 = vunpack.c.l.b16 %v33
    %v112 = vunpack.c.h.b16 %v33
    %v113 = vunpack.c.l.b16 %v34
    %v114 = vunpack.c.h.b16 %v34
    %v115 = vunpack.c.l.b16 %v35
    %v116 = vunpack.c.h.b16 %v35
    %v117 = vunpack.c.l.b16 %v36
    %v118 = vunpack.c.h.b16 %v36
    %v119 = vunpack.c.l.b16 %v37
    %v120 = vunpack.c.h.b16 %v37
    %v121 = vunpack.c.l.b16 %v38
    %v122 = vunpack.c.h.b16 %v38
    %v123 = vunpack.c.l.b16 %v39
    %v124 = vunpack.c.h.b16 %v39
    %v125 = vunpack.c.l.b16 %v40
    %v126 = vunpack.c.h.b16 %v40
    %v127 = vunpack.c.l.b16 %v41
    %v128 = vunpack.c.h.b16 %v41
    %v129 = vunpack.c.l.b16 %v42
    %v130 = vunpack.c.h.b16 %v42
    %v131 = vunpack.c.l.b16 %v43
    %v132 = vunpack.c.h.b16 %v43
    %v133 = vunpack.c.l.b16 %v44
    %v134 = vunpack.c.h.b16 %v44
    %v135 = vunpack.c.l.b16 %v45
    %v136 = vunpack.c.h.b16 %v45
    %v137 = vunpack.c.l.b16 %v46
    %v138 = vunpack.c.h.b16 %v46
    %v139 = vunpack.c.l.b16 %v47
    %v140 = vunpack.c.h.b16 %v47
    %v141 = vunpack.c.l.b16 %v48
    %v142 = vunpack.c.h.b16 %v48
    %v143 = vunpack.c.l.b16 %v49
    %v144 = vunpack.c.h.b16 %v49
    %v145 = vunpack.c.l.b16 %v50
    %v146 = vunpack.c.h.b16 %v50
    %v147 = vunpack.c.l.b16 %v51
    %v148 = vunpack.c.h.b16 %v51
    %v149 = vpack.c.b16 %v89, %v85
    %v150 = vpack.c.b16 %v90, %v86
    %v151 = vpack.c.b16 %v91, %v87
    %v152 = vpack.c.b16 %v92, %v88
    %v153 = vpack.c.b16 %v97, %v93
    %v154 = vpack.c.b16 %v98, %v94
    %v155 = vpack.c.b16 %v99, %v95
    %v156 = vpack.c.b16 %v100, %v96
    %v157 = vpack.c.b16 %v105, %v101
    %v158 = vpack.c.b16 %v106, %v102
    %v159 = vpack.c.b16 %v107, %v103
    %v160 = vpack.c.b16 %v108, %v104
    %v161 = vpack.c.b16 %v113, %v109
    %v162 = vpack.c.b16 %v114, %v110
    %v163 = vpack.c.b16 %v115, %v111
    %v164 = vpack.c.b16 %v116, %v112
    %v165 = vpack.c.b16 %v121, %v117
    %v166 = vpack.c.b16 %v122, %v118
    %v167 = vpack.c.b16 %v123, %v119
    %v168 = vpack.c.b16 %v124, %v120
    %v169 = vpack.c.b16 %v129, %v125
    %v170 = vpack.c.b16 %v130, %v126
    %v171 = vpack.c.b16 %v131, %v127
    %v172 = vpack.c.b16 %v132, %v128
    %v173 = vpack.c.b16 %v137, %v133
    %v174 = vpack.c.b16 %v138, %v134
    %v175 = vpack.c.b16 %v139, %v135
    %v176 = vpack.c.b16 %v140, %v136
    %v177 = vpack.c.b16 %v145, %v141
    %v178 = vpack.c.b16 %v146, %v142
    %v179 = vpack.c.b16 %v147, %v143
    %v180 = vpack.c.b16 %v148, %v144
    %v214 = vlaneseq
    %v215 = vshrl.u32 %v214, 7
    %v216 = vsub.s32 0, %v215
    %v217 = vrot.slane %v52, %v216
    %v218 = vlaneseq
    %v219 = vshrl.u32 %v218, 7
    %v220 = vsub.s32 1, %v219
    %v221 = vrot.slane %v52, %v220
    %v222 = vlaneseq
    %v223 = vshrl.u32 %v222, 7
    %v224 = vsub.s32 2, %v223
    %v225 = vrot.slane %v52, %v224
    %v226 = vlaneseq
    %v227 = vshrl.u32 %v226, 7
    %v228 = vsub.s32 3, %v227
    %v229 = vrot.slane %v52, %v228
    %234 = vmatprep.subr.bf16.mxu0 %v150
    %235 = vmatpush1.bf16.msra.mxu0 %v149
    %236 = vmatprep.subr.bf16.mxu0 %v154
    %237 = vmatpush1.bf16.msra.mxu0 %v153
    %238 = vmatprep.subr.bf16.mxu0 %v158
    %239 = vmatpush1.bf16.msra.mxu0 %v157
    %240 = vmatprep.subr.bf16.mxu0 %v162
    %241 = vmatpush1.bf16.msra.mxu0 %v161
    %242 = vmatprep.subr.bf16.mxu0 %v166
    %243 = vmatpush1.bf16.msra.mxu0 %v165
    %244 = vmatprep.subr.bf16.mxu0 %v170
    %245 = vmatpush1.bf16.msra.mxu0 %v169
    %246 = vmatprep.subr.bf16.mxu0 %v174
    %247 = vmatpush1.bf16.msra.mxu0 %v173
    %248 = vmatprep.subr.bf16.mxu0 %v178
    %249 = vmatpush1.bf16.msra.mxu0 %v177
    %250 = vmatprep.subr.bf16.mxu0 0
    %251 = vmatpush1.bf16.msra.mxu0 0
    %252 = vmatprep.subr.bf16.mxu0 0
    %253 = vmatpush1.bf16.msra.mxu0 0
    %254 = vmatprep.subr.bf16.mxu0 0
    %255 = vmatpush1.bf16.msra.mxu0 0
    %256 = vmatprep.subr.bf16.mxu0 0
    %257 = vmatpush1.bf16.msra.mxu0 0
    %258 = vmatprep.subr.bf16.mxu0 0
    %259 = vmatpush1.bf16.msra.mxu0 0
    %260 = vmatprep.subr.bf16.mxu0 0
    %261 = vmatpush1.bf16.msra.mxu0 0
    %262 = vmatprep.subr.bf16.mxu0 0
    %263 = vmatpush1.bf16.msra.mxu0 0
    %264 = vmatprep.subr.bf16.mxu0 0
    %265 = vmatpush1.bf16.msra.mxu0 0
    %266 = vmatprep.mubr.bf16.mxu0 0
    %267 = vmatmul.mubr.bf16.gmra.mrb[0].mxu0 0
    %v268 = vpop.f32.mrb[0].mxu0
    %v269 = vadd.f32 %v217, %v268
    %v270 = vpop.f32.mrb[0].mxu0
    %v271 = vadd.f32 %v221, %v270
    %v272 = vpop.f32.mrb[0].mxu0
    %v273 = vpop.f32.mrb[0].mxu0
    %274 = vdwg.mxu0
    %275 = vmatprep.subr.bf16.mxu0 %v152
    %276 = vmatpush1.bf16.msra.mxu0 %v151
    %277 = vmatprep.subr.bf16.mxu0 %v156
    %278 = vmatpush1.bf16.msra.mxu0 %v155
    %279 = vmatprep.subr.bf16.mxu0 %v160
    %280 = vmatpush1.bf16.msra.mxu0 %v159
    %281 = vmatprep.subr.bf16.mxu0 %v164
    %282 = vmatpush1.bf16.msra.mxu0 %v163
    %283 = vmatprep.subr.bf16.mxu0 %v168
    %284 = vmatpush1.bf16.msra.mxu0 %v167
    %285 = vmatprep.subr.bf16.mxu0 %v172
    %286 = vmatpush1.bf16.msra.mxu0 %v171
    %287 = vmatprep.subr.bf16.mxu0 %v176
    %288 = vmatpush1.bf16.msra.mxu0 %v175
    %289 = vmatprep.subr.bf16.mxu0 %v180
    %290 = vmatpush1.bf16.msra.mxu0 %v179
    %291 = vmatprep.subr.bf16.mxu0 0
    %292 = vmatpush1.bf16.msra.mxu0 0
    %293 = vmatprep.subr.bf16.mxu0 0
    %294 = vmatpush1.bf16.msra.mxu0 0
    %295 = vmatprep.subr.bf16.mxu0 0
    %296 = vmatpush1.bf16.msra.mxu0 0
    %297 = vmatprep.subr.bf16.mxu0 0
    %298 = vmatpush1.bf16.msra.mxu0 0
    %299 = vmatprep.subr.bf16.mxu0 0
    %300 = vmatpush1.bf16.msra.mxu0 0
    %301 = vmatprep.subr.bf16.mxu0 0
    %302 = vmatpush1.bf16.msra.mxu0 0
    %303 = vmatprep.subr.bf16.mxu0 0
    %304 = vmatpush1.bf16.msra.mxu0 0
    %305 = vmatprep.subr.bf16.mxu0 0
    %306 = vmatpush1.bf16.msra.mxu0 0
    %307 = vmatprep.mubr.bf16.mxu0 0
    %308 = vmatmul.mubr.bf16.gmra.mrb[0].mxu0 0
    %v309 = vpop.f32.mrb[0].mxu0
    %v310 = vadd.f32 %v225, %v309
    %v311 = vpop.f32.mrb[0].mxu0
    %v312 = vadd.f32 %v229, %v311
    %v313 = vpop.f32.mrb[0].mxu0
    %v314 = vpop.f32.mrb[0].mxu0
    %315 = vdwg.mxu0
    %v316 = vxor.u32 %v269, 2147483648
    %v317 = vxor.u32 %v271, 2147483648
    %v318 = vxor.u32 %v310, 2147483648
    %v319 = vmul.f32 %v316, 1.442695
    %v320 = vpow.pop %v319
    %v321 = vmul.f32 %v317, 1.442695
    %v322 = vpow.pop %v321
    %v323 = vmul.f32 %v318, 1.442695
    %v324 = vpow.pop %v323
    %v325 = vadd.f32 %v320, 1.0
    %v326 = vadd.f32 %v322, 1.0
    %v327 = vadd.f32 %v324, 1.0
    %v328 = vrcp.pop %v325
    %v329 = vmul.f32 1.0, %v328
    %v330 = vrcp.pop %v326
    %v331 = vmul.f32 1.0, %v330
    %v332 = vrcp.pop %v327
    %v333 = vmul.f32 1.0, %v332
    %v334 = vtanh.pop %v312
    %v335 = vmul.f32 %v331, 0.0
    %v336 = vmul.f32 %v329, %v334
    %v337 = vadd.f32 %v335, %v336
    %v338 = vtanh.pop %v337
    %v339 = vmul.f32 %v333, %v338
    %v340 = vpack.c.bf16 %v339, %v339
    %s341 = scalar_lea.vmem %s0, 1
    %v342 = vld [vmem:[%s341] ss:$8 sm:$0xf]
    %v344 = vlaneseq
    %v345 = vshrl.u32 %v344, 7
    %v346 = vsub.s32 0, %v345
    %v347 = vrot.slane %v342, %v346
    %v348 = vlaneseq
    %v349 = vshrl.u32 %v348, 7
    %v350 = vsub.s32 1, %v349
    %v351 = vrot.slane %v342, %v350
    %v352 = vlaneseq
    %v353 = vshrl.u32 %v352, 7
    %v354 = vsub.s32 2, %v353
    %v355 = vrot.slane %v342, %v354
    %v356 = vlaneseq
    %v357 = vshrl.u32 %v356, 7
    %v358 = vsub.s32 3, %v357
    %v359 = vrot.slane %v342, %v358
    %364 = vmatprep.subr.bf16.mxu0 %v150
    %365 = vmatpush1.bf16.msra.mxu0 %v149
    %366 = vmatprep.subr.bf16.mxu0 %v154
    %367 = vmatpush1.bf16.msra.mxu0 %v153
    %368 = vmatprep.subr.bf16.mxu0 %v158
    %369 = vmatpush1.bf16.msra.mxu0 %v157
    %370 = vmatprep.subr.bf16.mxu0 %v162
    %371 = vmatpush1.bf16.msra.mxu0 %v161
    %372 = vmatprep.subr.bf16.mxu0 %v166
    %373 = vmatpush1.bf16.msra.mxu0 %v165
    %374 = vmatprep.subr.bf16.mxu0 %v170
    %375 = vmatpush1.bf16.msra.mxu0 %v169
    %376 = vmatprep.subr.bf16.mxu0 %v174
    %377 = vmatpush1.bf16.msra.mxu0 %v173
    %378 = vmatprep.subr.bf16.mxu0 %v178
    %379 = vmatpush1.bf16.msra.mxu0 %v177
    %380 = vmatprep.subr.bf16.mxu0 0
    %381 = vmatpush1.bf16.msra.mxu0 0
    %382 = vmatprep.subr.bf16.mxu0 0
    %383 = vmatpush1.bf16.msra.mxu0 0
    %384 = vmatprep.subr.bf16.mxu0 0
    %385 = vmatpush1.bf16.msra.mxu0 0
    %386 = vmatprep.subr.bf16.mxu0 0
    %387 = vmatpush1.bf16.msra.mxu0 0
    %388 = vmatprep.subr.bf16.mxu0 0
    %389 = vmatpush1.bf16.msra.mxu0 0
    %390 = vmatprep.subr.bf16.mxu0 0
    %391 = vmatpush1.bf16.msra.mxu0 0
    %392 = vmatprep.subr.bf16.mxu0 0
    %393 = vmatpush1.bf16.msra.mxu0 0
    %394 = vmatprep.subr.bf16.mxu0 0
    %395 = vmatpush1.bf16.msra.mxu0 0
    %396 = vmatprep.mubr.bf16.mxu0 0
    %397 = vmatmul.mubr.bf16.gmra.mrb[0].mxu0 %v340
    %v398 = vpop.f32.mrb[0].mxu0
    %v399 = vadd.f32 %v347, %v398
    %v400 = vpop.f32.mrb[0].mxu0
    %v401 = vadd.f32 %v351, %v400
    %v402 = vpop.f32.mrb[0].mxu0
    %v403 = vpop.f32.mrb[0].mxu0
    %404 = vdwg.mxu0
    %405 = vmatprep.subr.bf16.mxu0 %v152
    %406 = vmatpush1.bf16.msra.mxu0 %v151
    %407 = vmatprep.subr.bf16.mxu0 %v156
    %408 = vmatpush1.bf16.msra.mxu0 %v155
    %409 = vmatprep.subr.bf16.mxu0 %v160
    %410 = vmatpush1.bf16.msra.mxu0 %v159
    %411 = vmatprep.subr.bf16.mxu0 %v164
    %412 = vmatpush1.bf16.msra.mxu0 %v163
    %413 = vmatprep.subr.bf16.mxu0 %v168
    %414 = vmatpush1.bf16.msra.mxu0 %v167
    %415 = vmatprep.subr.bf16.mxu0 %v172
    %416 = vmatpush1.bf16.msra.mxu0 %v171
    %417 = vmatprep.subr.bf16.mxu0 %v176
    %418 = vmatpush1.bf16.msra.mxu0 %v175
    %419 = vmatprep.subr.bf16.mxu0 %v180
    %420 = vmatpush1.bf16.msra.mxu0 %v179
    %421 = vmatprep.subr.bf16.mxu0 0
    %422 = vmatpush1.bf16.msra.mxu0 0
    %423 = vmatprep.subr.bf16.mxu0 0
    %424 = vmatpush1.bf16.msra.mxu0 0
    %425 = vmatprep.subr.bf16.mxu0 0
    %426 = vmatpush1.bf16.msra.mxu0 0
    %427 = vmatprep.subr.bf16.mxu0 0
    %428 = vmatpush1.bf16.msra.mxu0 0
    %429 = vmatprep.subr.bf16.mxu0 0
    %430 = vmatpush1.bf16.msra.mxu0 0
    %431 = vmatprep.subr.bf16.mxu0 0
    %432 = vmatpush1.bf16.msra.mxu0 0
    %433 = vmatprep.subr.bf16.mxu0 0
    %434 = vmatpush1.bf16.msra.mxu0 0
    %435 = vmatprep.subr.bf16.mxu0 0
    %436 = vmatpush1.bf16.msra.mxu0 0
    %437 = vmatprep.mubr.bf16.mxu0 0
    %438 = vmatmul.mubr.bf16.gmra.mrb[0].mxu0 %v340
    %v439 = vpop.f32.mrb[0].mxu0
    %v440 = vadd.f32 %v355, %v439
    %v441 = vpop.f32.mrb[0].mxu0
    %v442 = vadd.f32 %v359, %v441
    %v443 = vpop.f32.mrb[0].mxu0
    %v444 = vpop.f32.mrb[0].mxu0
    %445 = vdwg.mxu0
    %v446 = vxor.u32 %v399, 2147483648
    %v447 = vxor.u32 %v401, 2147483648
    %v448 = vxor.u32 %v440, 2147483648
    %v449 = vmul.f32 %v446, 1.442695
    %v450 = vpow.pop %v449
    %v451 = vmul.f32 %v447, 1.442695
    %v452 = vpow.pop %v451
    %v453 = vmul.f32 %v448, 1.442695
    %v454 = vpow.pop %v453
    %v455 = vadd.f32 %v450, 1.0
    %v456 = vadd.f32 %v452, 1.0
    %v457 = vadd.f32 %v454, 1.0
    %v458 = vrcp.pop %v455
    %v459 = vmul.f32 1.0, %v458
    %v460 = vrcp.pop %v456
    %v461 = vmul.f32 1.0, %v460
    %v462 = vrcp.pop %v457
    %v463 = vmul.f32 1.0, %v462
    %v464 = vtanh.pop %v442
    %v465 = vmul.f32 %v461, %v337
    %v466 = vmul.f32 %v459, %v464
    %v467 = vadd.f32 %v465, %v466
    %v468 = vtanh.pop %v467
    %v469 = vmul.f32 %v463, %v468
    %v470 = vpack.c.bf16 %v469, %v469
    %s471 = scalar_lea.vmem %s0, 2
    %v472 = vld [vmem:[%s471] ss:$8 sm:$0xf]
    %v474 = vlaneseq
    %v475 = vshrl.u32 %v474, 7
    %v476 = vsub.s32 0, %v475
    %v477 = vrot.slane %v472, %v476
    %v478 = vlaneseq
    %v479 = vshrl.u32 %v478, 7
    %v480 = vsub.s32 1, %v479
    %v481 = vrot.slane %v472, %v480
    %v482 = vlaneseq
    %v483 = vshrl.u32 %v482, 7
    %v484 = vsub.s32 2, %v483
    %v485 = vrot.slane %v472, %v484
    %v486 = vlaneseq
    %v487 = vshrl.u32 %v486, 7
    %v488 = vsub.s32 3, %v487
    %v489 = vrot.slane %v472, %v488
    %494 = vmatprep.subr.bf16.mxu0 %v150
    %495 = vmatpush1.bf16.msra.mxu0 %v149
    %496 = vmatprep.subr.bf16.mxu0 %v154
    %497 = vmatpush1.bf16.msra.mxu0 %v153
    %498 = vmatprep.subr.bf16.mxu0 %v158
    %499 = vmatpush1.bf16.msra.mxu0 %v157
    %500 = vmatprep.subr.bf16.mxu0 %v162
    %501 = vmatpush1.bf16.msra.mxu0 %v161
    %502 = vmatprep.subr.bf16.mxu0 %v166
    %503 = vmatpush1.bf16.msra.mxu0 %v165
    %504 = vmatprep.subr.bf16.mxu0 %v170
    %505 = vmatpush1.bf16.msra.mxu0 %v169
    %506 = vmatprep.subr.bf16.mxu0 %v174
    %507 = vmatpush1.bf16.msra.mxu0 %v173
    %508 = vmatprep.subr.bf16.mxu0 %v178
    %509 = vmatpush1.bf16.msra.mxu0 %v177
    %510 = vmatprep.subr.bf16.mxu0 0
    %511 = vmatpush1.bf16.msra.mxu0 0
    %512 = vmatprep.subr.bf16.mxu0 0
    %513 = vmatpush1.bf16.msra.mxu0 0
    %514 = vmatprep.subr.bf16.mxu0 0
    %515 = vmatpush1.bf16.msra.mxu0 0
    %516 = vmatprep.subr.bf16.mxu0 0
    %517 = vmatpush1.bf16.msra.mxu0 0
    %518 = vmatprep.subr.bf16.mxu0 0
    %519 = vmatpush1.bf16.msra.mxu0 0
    %520 = vmatprep.subr.bf16.mxu0 0
    %521 = vmatpush1.bf16.msra.mxu0 0
    %522 = vmatprep.subr.bf16.mxu0 0
    %523 = vmatpush1.bf16.msra.mxu0 0
    %524 = vmatprep.subr.bf16.mxu0 0
    %525 = vmatpush1.bf16.msra.mxu0 0
    %526 = vmatprep.mubr.bf16.mxu0 0
    %527 = vmatmul.mubr.bf16.gmra.mrb[0].mxu0 %v470
    %v528 = vpop.f32.mrb[0].mxu0
    %v529 = vadd.f32 %v477, %v528
    %v530 = vpop.f32.mrb[0].mxu0
    %v531 = vadd.f32 %v481, %v530
    %v532 = vpop.f32.mrb[0].mxu0
    %v533 = vpop.f32.mrb[0].mxu0
    %534 = vdwg.mxu0
    %535 = vmatprep.subr.bf16.mxu0 %v152
    %536 = vmatpush1.bf16.msra.mxu0 %v151
    %537 = vmatprep.subr.bf16.mxu0 %v156
    %538 = vmatpush1.bf16.msra.mxu0 %v155
    %539 = vmatprep.subr.bf16.mxu0 %v160
    %540 = vmatpush1.bf16.msra.mxu0 %v159
    %541 = vmatprep.subr.bf16.mxu0 %v164
    %542 = vmatpush1.bf16.msra.mxu0 %v163
    %543 = vmatprep.subr.bf16.mxu0 %v168
    %544 = vmatpush1.bf16.msra.mxu0 %v167
    %545 = vmatprep.subr.bf16.mxu0 %v172
    %546 = vmatpush1.bf16.msra.mxu0 %v171
    %547 = vmatprep.subr.bf16.mxu0 %v176
    %548 = vmatpush1.bf16.msra.mxu0 %v175
    %549 = vmatprep.subr.bf16.mxu0 %v180
    %550 = vmatpush1.bf16.msra.mxu0 %v179
    %551 = vmatprep.subr.bf16.mxu0 0
    %552 = vmatpush1.bf16.msra.mxu0 0
    %553 = vmatprep.subr.bf16.mxu0 0
    %554 = vmatpush1.bf16.msra.mxu0 0
    %555 = vmatprep.subr.bf16.mxu0 0
    %556 = vmatpush1.bf16.msra.mxu0 0
    %557 = vmatprep.subr.bf16.mxu0 0
    %558 = vmatpush1.bf16.msra.mxu0 0
    %559 = vmatprep.subr.bf16.mxu0 0
    %560 = vmatpush1.bf16.msra.mxu0 0
    %561 = vmatprep.subr.bf16.mxu0 0
    %562 = vmatpush1.bf16.msra.mxu0 0
    %563 = vmatprep.subr.bf16.mxu0 0
    %564 = vmatpush1.bf16.msra.mxu0 0
    %565 = vmatprep.subr.bf16.mxu0 0
    %566 = vmatpush1.bf16.msra.mxu0 0
    %567 = vmatprep.mubr.bf16.mxu0 0
    %568 = vmatmul.mubr.bf16.gmra.mrb[0].mxu0 %v470
    %v569 = vpop.f32.mrb[0].mxu0
    %v570 = vadd.f32 %v485, %v569
    %v571 = vpop.f32.mrb[0].mxu0
    %v572 = vadd.f32 %v489, %v571
    %v573 = vpop.f32.mrb[0].mxu0
    %v574 = vpop.f32.mrb[0].mxu0
    %575 = vdwg.mxu0
    %v576 = vxor.u32 %v529, 2147483648
    %v577 = vxor.u32 %v531, 2147483648
    %v578 = vxor.u32 %v570, 2147483648
    %v579 = vmul.f32 %v576, 1.442695
    %v580 = vpow.pop %v579
    %v581 = vmul.f32 %v577, 1.442695
    %v582 = vpow.pop %v581
    %v583 = vmul.f32 %v578, 1.442695
    %v584 = vpow.pop %v583
    %v585 = vadd.f32 %v580, 1.0
    %v586 = vadd.f32 %v582, 1.0
    %v587 = vadd.f32 %v584, 1.0
    %v588 = vrcp.pop %v585
    %v589 = vmul.f32 1.0, %v588
    %v590 = vrcp.pop %v586
    %v591 = vmul.f32 1.0, %v590
    %v592 = vrcp.pop %v587
    %v593 = vmul.f32 1.0, %v592
    %v594 = vtanh.pop %v572
    %v595 = vmul.f32 %v591, %v467
    %v596 = vmul.f32 %v589, %v594
    %v597 = vadd.f32 %v595, %v596
    %v598 = vtanh.pop %v597
    %v599 = vmul.f32 %v593, %v598
    %v600 = vpack.c.bf16 %v599, %v599
    %s601 = scalar_lea.vmem %s0, 3
    %v602 = vld [vmem:[%s601] ss:$8 sm:$0xf]
    %v604 = vlaneseq
    %v605 = vshrl.u32 %v604, 7
    %v606 = vsub.s32 0, %v605
    %v607 = vrot.slane %v602, %v606
    %v608 = vlaneseq
    %v609 = vshrl.u32 %v608, 7
    %v610 = vsub.s32 1, %v609
    %v611 = vrot.slane %v602, %v610
    %v612 = vlaneseq
    %v613 = vshrl.u32 %v612, 7
    %v614 = vsub.s32 2, %v613
    %v615 = vrot.slane %v602, %v614
    %v616 = vlaneseq
    %v617 = vshrl.u32 %v616, 7
    %v618 = vsub.s32 3, %v617
    %v619 = vrot.slane %v602, %v618
    %624 = vmatprep.subr.bf16.mxu0 %v150
    %625 = vmatpush1.bf16.msra.mxu0 %v149
    %626 = vmatprep.subr.bf16.mxu0 %v154
    %627 = vmatpush1.bf16.msra.mxu0 %v153
    %628 = vmatprep.subr.bf16.mxu0 %v158
    %629 = vmatpush1.bf16.msra.mxu0 %v157
    %630 = vmatprep.subr.bf16.mxu0 %v162
    %631 = vmatpush1.bf16.msra.mxu0 %v161
    %632 = vmatprep.subr.bf16.mxu0 %v166
    %633 = vmatpush1.bf16.msra.mxu0 %v165
    %634 = vmatprep.subr.bf16.mxu0 %v170
    %635 = vmatpush1.bf16.msra.mxu0 %v169
    %636 = vmatprep.subr.bf16.mxu0 %v174
    %637 = vmatpush1.bf16.msra.mxu0 %v173
    %638 = vmatprep.subr.bf16.mxu0 %v178
    %639 = vmatpush1.bf16.msra.mxu0 %v177
    %640 = vmatprep.subr.bf16.mxu0 0
    %641 = vmatpush1.bf16.msra.mxu0 0
    %642 = vmatprep.subr.bf16.mxu0 0
    %643 = vmatpush1.bf16.msra.mxu0 0
    %644 = vmatprep.subr.bf16.mxu0 0
    %645 = vmatpush1.bf16.msra.mxu0 0
    %646 = vmatprep.subr.bf16.mxu0 0
    %647 = vmatpush1.bf16.msra.mxu0 0
    %648 = vmatprep.subr.bf16.mxu0 0
    %649 = vmatpush1.bf16.msra.mxu0 0
    %650 = vmatprep.subr.bf16.mxu0 0
    %651 = vmatpush1.bf16.msra.mxu0 0
    %652 = vmatprep.subr.bf16.mxu0 0
    %653 = vmatpush1.bf16.msra.mxu0 0
    %654 = vmatprep.subr.bf16.mxu0 0
    %655 = vmatpush1.bf16.msra.mxu0 0
    %656 = vmatprep.mubr.bf16.mxu0 0
    %657 = vmatmul.mubr.bf16.gmra.mrb[0].mxu0 %v600
    %v658 = vpop.f32.mrb[0].mxu0
    %v659 = vadd.f32 %v607, %v658
    %v660 = vpop.f32.mrb[0].mxu0
    %v661 = vadd.f32 %v611, %v660
    %v662 = vpop.f32.mrb[0].mxu0
    %v663 = vpop.f32.mrb[0].mxu0
    %664 = vdwg.mxu0
    %665 = vmatprep.subr.bf16.mxu0 %v152
    %666 = vmatpush1.bf16.msra.mxu0 %v151
    %667 = vmatprep.subr.bf16.mxu0 %v156
    %668 = vmatpush1.bf16.msra.mxu0 %v155
    %669 = vmatprep.subr.bf16.mxu0 %v160
    %670 = vmatpush1.bf16.msra.mxu0 %v159
    %671 = vmatprep.subr.bf16.mxu0 %v164
    %672 = vmatpush1.bf16.msra.mxu0 %v163
    %673 = vmatprep.subr.bf16.mxu0 %v168
    %674 = vmatpush1.bf16.msra.mxu0 %v167
    %675 = vmatprep.subr.bf16.mxu0 %v172
    %676 = vmatpush1.bf16.msra.mxu0 %v171
    %677 = vmatprep.subr.bf16.mxu0 %v176
    %678 = vmatpush1.bf16.msra.mxu0 %v175
    %679 = vmatprep.subr.bf16.mxu0 %v180
    %680 = vmatpush1.bf16.msra.mxu0 %v179
    %681 = vmatprep.subr.bf16.mxu0 0
    %682 = vmatpush1.bf16.msra.mxu0 0
    %683 = vmatprep.subr.bf16.mxu0 0
    %684 = vmatpush1.bf16.msra.mxu0 0
    %685 = vmatprep.subr.bf16.mxu0 0
    %686 = vmatpush1.bf16.msra.mxu0 0
    %687 = vmatprep.subr.bf16.mxu0 0
    %688 = vmatpush1.bf16.msra.mxu0 0
    %689 = vmatprep.subr.bf16.mxu0 0
    %690 = vmatpush1.bf16.msra.mxu0 0
    %691 = vmatprep.subr.bf16.mxu0 0
    %692 = vmatpush1.bf16.msra.mxu0 0
    %693 = vmatprep.subr.bf16.mxu0 0
    %694 = vmatpush1.bf16.msra.mxu0 0
    %695 = vmatprep.subr.bf16.mxu0 0
    %696 = vmatpush1.bf16.msra.mxu0 0
    %697 = vmatprep.mubr.bf16.mxu0 0
    %698 = vmatmul.mubr.bf16.gmra.mrb[0].mxu0 %v600
    %v699 = vpop.f32.mrb[0].mxu0
    %v700 = vadd.f32 %v615, %v699
    %v701 = vpop.f32.mrb[0].mxu0
    %v702 = vadd.f32 %v619, %v701
    %v703 = vpop.f32.mrb[0].mxu0
    %v704 = vpop.f32.mrb[0].mxu0
    %705 = vdwg.mxu0
    %v706 = vxor.u32 %v659, 2147483648
    %v707 = vxor.u32 %v661, 2147483648
    %v708 = vxor.u32 %v700, 2147483648
    %v709 = vmul.f32 %v706, 1.442695
    %v710 = vpow.pop %v709
    %v711 = vmul.f32 %v707, 1.442695
    %v712 = vpow.pop %v711
    %v713 = vmul.f32 %v708, 1.442695
    %v714 = vpow.pop %v713
    %v715 = vadd.f32 %v710, 1.0
    %v716 = vadd.f32 %v712, 1.0
    %v717 = vadd.f32 %v714, 1.0
    %v718 = vrcp.pop %v715
    %v719 = vmul.f32 1.0, %v718
    %v720 = vrcp.pop %v716
    %v721 = vmul.f32 1.0, %v720
    %v722 = vrcp.pop %v717
    %v723 = vmul.f32 1.0, %v722
    %v724 = vtanh.pop %v702
    %v725 = vmul.f32 %v721, %v597
    %v726 = vmul.f32 %v719, %v724
    %v727 = vadd.f32 %v725, %v726
    %v728 = vtanh.pop %v727
    %v729 = vmul.f32 %v723, %v728
    %v730 = vpack.c.bf16 %v729, %v729
    %s731 = scalar_lea.vmem %s0, 4
    %v732 = vld [vmem:[%s731] ss:$8 sm:$0xf]
    %v734 = vlaneseq
    %v735 = vshrl.u32 %v734, 7
    %v736 = vsub.s32 0, %v735
    %v737 = vrot.slane %v732, %v736
    %v738 = vlaneseq
    %v739 = vshrl.u32 %v738, 7
    %v740 = vsub.s32 1, %v739
    %v741 = vrot.slane %v732, %v740
    %v742 = vlaneseq
    %v743 = vshrl.u32 %v742, 7
    %v744 = vsub.s32 2, %v743
    %v745 = vrot.slane %v732, %v744
    %v746 = vlaneseq
    %v747 = vshrl.u32 %v746, 7
    %v748 = vsub.s32 3, %v747
    %v749 = vrot.slane %v732, %v748
    %754 = vmatprep.subr.bf16.mxu0 %v150
    %755 = vmatpush1.bf16.msra.mxu0 %v149
    %756 = vmatprep.subr.bf16.mxu0 %v154
    %757 = vmatpush1.bf16.msra.mxu0 %v153
    %758 = vmatprep.subr.bf16.mxu0 %v158
    %759 = vmatpush1.bf16.msra.mxu0 %v157
    %760 = vmatprep.subr.bf16.mxu0 %v162
    %761 = vmatpush1.bf16.msra.mxu0 %v161
    %762 = vmatprep.subr.bf16.mxu0 %v166
    %763 = vmatpush1.bf16.msra.mxu0 %v165
    %764 = vmatprep.subr.bf16.mxu0 %v170
    %765 = vmatpush1.bf16.msra.mxu0 %v169
    %766 = vmatprep.subr.bf16.mxu0 %v174
    %767 = vmatpush1.bf16.msra.mxu0 %v173
    %768 = vmatprep.subr.bf16.mxu0 %v178
    %769 = vmatpush1.bf16.msra.mxu0 %v177
    %770 = vmatprep.subr.bf16.mxu0 0
    %771 = vmatpush1.bf16.msra.mxu0 0
    %772 = vmatprep.subr.bf16.mxu0 0
    %773 = vmatpush1.bf16.msra.mxu0 0
    %774 = vmatprep.subr.bf16.mxu0 0
    %775 = vmatpush1.bf16.msra.mxu0 0
    %776 = vmatprep.subr.bf16.mxu0 0
    %777 = vmatpush1.bf16.msra.mxu0 0
    %778 = vmatprep.subr.bf16.mxu0 0
    %779 = vmatpush1.bf16.msra.mxu0 0
    %780 = vmatprep.subr.bf16.mxu0 0
    %781 = vmatpush1.bf16.msra.mxu0 0
    %782 = vmatprep.subr.bf16.mxu0 0
    %783 = vmatpush1.bf16.msra.mxu0 0
    %784 = vmatprep.subr.bf16.mxu0 0
    %785 = vmatpush1.bf16.msra.mxu0 0
    %786 = vmatprep.mubr.bf16.mxu0 0
    %787 = vmatmul.mubr.bf16.gmra.mrb[0].mxu0 %v730
    %v788 = vpop.f32.mrb[0].mxu0
    %v789 = vadd.f32 %v737, %v788
    %v790 = vpop.f32.mrb[0].mxu0
    %v791 = vadd.f32 %v741, %v790
    %v792 = vpop.f32.mrb[0].mxu0
    %v793 = vpop.f32.mrb[0].mxu0
    %794 = vdwg.mxu0
    %795 = vmatprep.subr.bf16.mxu0 %v152
    %796 = vmatpush1.bf16.msra.mxu0 %v151
    %797 = vmatprep.subr.bf16.mxu0 %v156
    %798 = vmatpush1.bf16.msra.mxu0 %v155
    %799 = vmatprep.subr.bf16.mxu0 %v160
    %800 = vmatpush1.bf16.msra.mxu0 %v159
    %801 = vmatprep.subr.bf16.mxu0 %v164
    %802 = vmatpush1.bf16.msra.mxu0 %v163
    %803 = vmatprep.subr.bf16.mxu0 %v168
    %804 = vmatpush1.bf16.msra.mxu0 %v167
    %805 = vmatprep.subr.bf16.mxu0 %v172
    %806 = vmatpush1.bf16.msra.mxu0 %v171
    %807 = vmatprep.subr.bf16.mxu0 %v176
    %808 = vmatpush1.bf16.msra.mxu0 %v175
    %809 = vmatprep.subr.bf16.mxu0 %v180
    %810 = vmatpush1.bf16.msra.mxu0 %v179
    %811 = vmatprep.subr.bf16.mxu0 0
    %812 = vmatpush1.bf16.msra.mxu0 0
    %813 = vmatprep.subr.bf16.mxu0 0
    %814 = vmatpush1.bf16.msra.mxu0 0
    %815 = vmatprep.subr.bf16.mxu0 0
    %816 = vmatpush1.bf16.msra.mxu0 0
    %817 = vmatprep.subr.bf16.mxu0 0
    %818 = vmatpush1.bf16.msra.mxu0 0
    %819 = vmatprep.subr.bf16.mxu0 0
    %820 = vmatpush1.bf16.msra.mxu0 0
    %821 = vmatprep.subr.bf16.mxu0 0
    %822 = vmatpush1.bf16.msra.mxu0 0
    %823 = vmatprep.subr.bf16.mxu0 0
    %824 = vmatpush1.bf16.msra.mxu0 0
    %825 = vmatprep.subr.bf16.mxu0 0
    %826 = vmatpush1.bf16.msra.mxu0 0
    %827 = vmatprep.mubr.bf16.mxu0 0
    %828 = vmatmul.mubr.bf16.gmra.mrb[0].mxu0 %v730
    %v829 = vpop.f32.mrb[0].mxu0
    %v830 = vadd.f32 %v745, %v829
    %v831 = vpop.f32.mrb[0].mxu0
    %v832 = vadd.f32 %v749, %v831
    %v833 = vpop.f32.mrb[0].mxu0
    %v834 = vpop.f32.mrb[0].mxu0
    %835 = vdwg.mxu0
    %v836 = vxor.u32 %v789, 2147483648
    %v837 = vxor.u32 %v791, 2147483648
    %v838 = vxor.u32 %v830, 2147483648
    %v839 = vmul.f32 %v836, 1.442695
    %v840 = vpow.pop %v839
    %v841 = vmul.f32 %v837, 1.442695
    %v842 = vpow.pop %v841
    %v843 = vmul.f32 %v838, 1.442695
    %v844 = vpow.pop %v843
    %v845 = vadd.f32 %v840, 1.0
    %v846 = vadd.f32 %v842, 1.0
    %v847 = vadd.f32 %v844, 1.0
    %v848 = vrcp.pop %v845
    %v849 = vmul.f32 1.0, %v848
    %v850 = vrcp.pop %v846
    %v851 = vmul.f32 1.0, %v850
    %v852 = vrcp.pop %v847
    %v853 = vmul.f32 1.0, %v852
    %v854 = vtanh.pop %v832
    %v855 = vmul.f32 %v851, %v727
    %v856 = vmul.f32 %v849, %v854
    %v857 = vadd.f32 %v855, %v856
    %v858 = vtanh.pop %v857
    %v859 = vmul.f32 %v853, %v858
    %v860 = vpack.c.bf16 %v859, %v859
    %s861 = scalar_lea.vmem %s0, 5
    %v862 = vld [vmem:[%s861] ss:$8 sm:$0xf]
    %v864 = vlaneseq
    %v865 = vshrl.u32 %v864, 7
    %v866 = vsub.s32 0, %v865
    %v867 = vrot.slane %v862, %v866
    %v868 = vlaneseq
    %v869 = vshrl.u32 %v868, 7
    %v870 = vsub.s32 1, %v869
    %v871 = vrot.slane %v862, %v870
    %v872 = vlaneseq
    %v873 = vshrl.u32 %v872, 7
    %v874 = vsub.s32 2, %v873
    %v875 = vrot.slane %v862, %v874
    %v876 = vlaneseq
    %v877 = vshrl.u32 %v876, 7
    %v878 = vsub.s32 3, %v877
    %v879 = vrot.slane %v862, %v878
    %884 = vmatprep.subr.bf16.mxu0 %v150
    %885 = vmatpush1.bf16.msra.mxu0 %v149
    %886 = vmatprep.subr.bf16.mxu0 %v154
    %887 = vmatpush1.bf16.msra.mxu0 %v153
    %888 = vmatprep.subr.bf16.mxu0 %v158
    %889 = vmatpush1.bf16.msra.mxu0 %v157
    %890 = vmatprep.subr.bf16.mxu0 %v162
    %891 = vmatpush1.bf16.msra.mxu0 %v161
    %892 = vmatprep.subr.bf16.mxu0 %v166
    %893 = vmatpush1.bf16.msra.mxu0 %v165
    %894 = vmatprep.subr.bf16.mxu0 %v170
    %895 = vmatpush1.bf16.msra.mxu0 %v169
    %896 = vmatprep.subr.bf16.mxu0 %v174
    %897 = vmatpush1.bf16.msra.mxu0 %v173
    %898 = vmatprep.subr.bf16.mxu0 %v178
    %899 = vmatpush1.bf16.msra.mxu0 %v177
    %900 = vmatprep.subr.bf16.mxu0 0
    %901 = vmatpush1.bf16.msra.mxu0 0
    %902 = vmatprep.subr.bf16.mxu0 0
    %903 = vmatpush1.bf16.msra.mxu0 0
    %904 = vmatprep.subr.bf16.mxu0 0
    %905 = vmatpush1.bf16.msra.mxu0 0
    %906 = vmatprep.subr.bf16.mxu0 0
    %907 = vmatpush1.bf16.msra.mxu0 0
    %908 = vmatprep.subr.bf16.mxu0 0
    %909 = vmatpush1.bf16.msra.mxu0 0
    %910 = vmatprep.subr.bf16.mxu0 0
    %911 = vmatpush1.bf16.msra.mxu0 0
    %912 = vmatprep.subr.bf16.mxu0 0
    %913 = vmatpush1.bf16.msra.mxu0 0
    %914 = vmatprep.subr.bf16.mxu0 0
    %915 = vmatpush1.bf16.msra.mxu0 0
    %916 = vmatprep.mubr.bf16.mxu0 0
    %917 = vmatmul.mubr.bf16.gmra.mrb[0].mxu0 %v860
    %v918 = vpop.f32.mrb[0].mxu0
    %v919 = vadd.f32 %v867, %v918
    %v920 = vpop.f32.mrb[0].mxu0
    %v921 = vadd.f32 %v871, %v920
    %v922 = vpop.f32.mrb[0].mxu0
    %v923 = vpop.f32.mrb[0].mxu0
    %924 = vdwg.mxu0
    %925 = vmatprep.subr.bf16.mxu0 %v152
    %926 = vmatpush1.bf16.msra.mxu0 %v151
    %927 = vmatprep.subr.bf16.mxu0 %v156
    %928 = vmatpush1.bf16.msra.mxu0 %v155
    %929 = vmatprep.subr.bf16.mxu0 %v160
    %930 = vmatpush1.bf16.msra.mxu0 %v159
    %931 = vmatprep.subr.bf16.mxu0 %v164
    %932 = vmatpush1.bf16.msra.mxu0 %v163
    %933 = vmatprep.subr.bf16.mxu0 %v168
    %934 = vmatpush1.bf16.msra.mxu0 %v167
    %935 = vmatprep.subr.bf16.mxu0 %v172
    %936 = vmatpush1.bf16.msra.mxu0 %v171
    %937 = vmatprep.subr.bf16.mxu0 %v176
    %938 = vmatpush1.bf16.msra.mxu0 %v175
    %939 = vmatprep.subr.bf16.mxu0 %v180
    %940 = vmatpush1.bf16.msra.mxu0 %v179
    %941 = vmatprep.subr.bf16.mxu0 0
    %942 = vmatpush1.bf16.msra.mxu0 0
    %943 = vmatprep.subr.bf16.mxu0 0
    %944 = vmatpush1.bf16.msra.mxu0 0
    %945 = vmatprep.subr.bf16.mxu0 0
    %946 = vmatpush1.bf16.msra.mxu0 0
    %947 = vmatprep.subr.bf16.mxu0 0
    %948 = vmatpush1.bf16.msra.mxu0 0
    %949 = vmatprep.subr.bf16.mxu0 0
    %950 = vmatpush1.bf16.msra.mxu0 0
    %951 = vmatprep.subr.bf16.mxu0 0
    %952 = vmatpush1.bf16.msra.mxu0 0
    %953 = vmatprep.subr.bf16.mxu0 0
    %954 = vmatpush1.bf16.msra.mxu0 0
    %955 = vmatprep.subr.bf16.mxu0 0
    %956 = vmatpush1.bf16.msra.mxu0 0
    %957 = vmatprep.mubr.bf16.mxu0 0
    %958 = vmatmul.mubr.bf16.gmra.mrb[0].mxu0 %v860
    %v959 = vpop.f32.mrb[0].mxu0
    %v960 = vadd.f32 %v875, %v959
    %v961 = vpop.f32.mrb[0].mxu0
    %v962 = vadd.f32 %v879, %v961
    %v963 = vpop.f32.mrb[0].mxu0
    %v964 = vpop.f32.mrb[0].mxu0
    %965 = vdwg.mxu0
    %v966 = vxor.u32 %v919, 2147483648
    %v967 = vxor.u32 %v921, 2147483648
    %v968 = vxor.u32 %v960, 2147483648
    %v969 = vmul.f32 %v966, 1.442695
    %v970 = vpow.pop %v969
    %v971 = vmul.f32 %v967, 1.442695
    %v972 = vpow.pop %v971
    %v973 = vmul.f32 %v968, 1.442695
    %v974 = vpow.pop %v973
    %v975 = vadd.f32 %v970, 1.0
    %v976 = vadd.f32 %v972, 1.0
    %v977 = vadd.f32 %v974, 1.0
    %v978 = vrcp.pop %v975
    %v979 = vmul.f32 1.0, %v978
    %v980 = vrcp.pop %v976
    %v981 = vmul.f32 1.0, %v980
    %v982 = vrcp.pop %v977
    %v983 = vmul.f32 1.0, %v982
    %v984 = vtanh.pop %v962
    %v985 = vmul.f32 %v981, %v857
    %v986 = vmul.f32 %v979, %v984
    %v987 = vadd.f32 %v985, %v986
    %v988 = vtanh.pop %v987
    %v989 = vmul.f32 %v983, %v988
    %v990 = vpack.c.bf16 %v989, %v989
    %s991 = scalar_lea.vmem %s0, 6
    %v992 = vld [vmem:[%s991] ss:$8 sm:$0xf]
    %v994 = vlaneseq
    %v995 = vshrl.u32 %v994, 7
    %v996 = vsub.s32 0, %v995
    %v997 = vrot.slane %v992, %v996
    %v998 = vlaneseq
    %v999 = vshrl.u32 %v998, 7
    %v1000 = vsub.s32 1, %v999
    %v1001 = vrot.slane %v992, %v1000
    %v1002 = vlaneseq
    %v1003 = vshrl.u32 %v1002, 7
    %v1004 = vsub.s32 2, %v1003
    %v1005 = vrot.slane %v992, %v1004
    %v1006 = vlaneseq
    %v1007 = vshrl.u32 %v1006, 7
    %v1008 = vsub.s32 3, %v1007
    %v1009 = vrot.slane %v992, %v1008
    %1014 = vmatprep.subr.bf16.mxu0 %v150
    %1015 = vmatpush1.bf16.msra.mxu0 %v149
    %1016 = vmatprep.subr.bf16.mxu0 %v154
    %1017 = vmatpush1.bf16.msra.mxu0 %v153
    %1018 = vmatprep.subr.bf16.mxu0 %v158
    %1019 = vmatpush1.bf16.msra.mxu0 %v157
    %1020 = vmatprep.subr.bf16.mxu0 %v162
    %1021 = vmatpush1.bf16.msra.mxu0 %v161
    %1022 = vmatprep.subr.bf16.mxu0 %v166
    %1023 = vmatpush1.bf16.msra.mxu0 %v165
    %1024 = vmatprep.subr.bf16.mxu0 %v170
    %1025 = vmatpush1.bf16.msra.mxu0 %v169
    %1026 = vmatprep.subr.bf16.mxu0 %v174
    %1027 = vmatpush1.bf16.msra.mxu0 %v173
    %1028 = vmatprep.subr.bf16.mxu0 %v178
    %1029 = vmatpush1.bf16.msra.mxu0 %v177
    %1030 = vmatprep.subr.bf16.mxu0 0
    %1031 = vmatpush1.bf16.msra.mxu0 0
    %1032 = vmatprep.subr.bf16.mxu0 0
    %1033 = vmatpush1.bf16.msra.mxu0 0
    %1034 = vmatprep.subr.bf16.mxu0 0
    %1035 = vmatpush1.bf16.msra.mxu0 0
    %1036 = vmatprep.subr.bf16.mxu0 0
    %1037 = vmatpush1.bf16.msra.mxu0 0
    %1038 = vmatprep.subr.bf16.mxu0 0
    %1039 = vmatpush1.bf16.msra.mxu0 0
    %1040 = vmatprep.subr.bf16.mxu0 0
    %1041 = vmatpush1.bf16.msra.mxu0 0
    %1042 = vmatprep.subr.bf16.mxu0 0
    %1043 = vmatpush1.bf16.msra.mxu0 0
    %1044 = vmatprep.subr.bf16.mxu0 0
    %1045 = vmatpush1.bf16.msra.mxu0 0
    %1046 = vmatprep.mubr.bf16.mxu0 0
    %1047 = vmatmul.mubr.bf16.gmra.mrb[0].mxu0 %v990
    %v1048 = vpop.f32.mrb[0].mxu0
    %v1049 = vadd.f32 %v997, %v1048
    %v1050 = vpop.f32.mrb[0].mxu0
    %v1051 = vadd.f32 %v1001, %v1050
    %v1052 = vpop.f32.mrb[0].mxu0
    %v1053 = vpop.f32.mrb[0].mxu0
    %1054 = vdwg.mxu0
    %1055 = vmatprep.subr.bf16.mxu0 %v152
    %1056 = vmatpush1.bf16.msra.mxu0 %v151
    %1057 = vmatprep.subr.bf16.mxu0 %v156
    %1058 = vmatpush1.bf16.msra.mxu0 %v155
    %1059 = vmatprep.subr.bf16.mxu0 %v160
    %1060 = vmatpush1.bf16.msra.mxu0 %v159
    %1061 = vmatprep.subr.bf16.mxu0 %v164
    %1062 = vmatpush1.bf16.msra.mxu0 %v163
    %1063 = vmatprep.subr.bf16.mxu0 %v168
    %1064 = vmatpush1.bf16.msra.mxu0 %v167
    %1065 = vmatprep.subr.bf16.mxu0 %v172
    %1066 = vmatpush1.bf16.msra.mxu0 %v171
    %1067 = vmatprep.subr.bf16.mxu0 %v176
    %1068 = vmatpush1.bf16.msra.mxu0 %v175
    %1069 = vmatprep.subr.bf16.mxu0 %v180
    %1070 = vmatpush1.bf16.msra.mxu0 %v179
    %1071 = vmatprep.subr.bf16.mxu0 0
    %1072 = vmatpush1.bf16.msra.mxu0 0
    %1073 = vmatprep.subr.bf16.mxu0 0
    %1074 = vmatpush1.bf16.msra.mxu0 0
    %1075 = vmatprep.subr.bf16.mxu0 0
    %1076 = vmatpush1.bf16.msra.mxu0 0
    %1077 = vmatprep.subr.bf16.mxu0 0
    %1078 = vmatpush1.bf16.msra.mxu0 0
    %1079 = vmatprep.subr.bf16.mxu0 0
    %1080 = vmatpush1.bf16.msra.mxu0 0
    %1081 = vmatprep.subr.bf16.mxu0 0
    %1082 = vmatpush1.bf16.msra.mxu0 0
    %1083 = vmatprep.subr.bf16.mxu0 0
    %1084 = vmatpush1.bf16.msra.mxu0 0
    %1085 = vmatprep.subr.bf16.mxu0 0
    %1086 = vmatpush1.bf16.msra.mxu0 0
    %1087 = vmatprep.mubr.bf16.mxu0 0
    %1088 = vmatmul.mubr.bf16.gmra.mrb[0].mxu0 %v990
    %v1089 = vpop.f32.mrb[0].mxu0
    %v1090 = vadd.f32 %v1005, %v1089
    %v1091 = vpop.f32.mrb[0].mxu0
    %v1092 = vadd.f32 %v1009, %v1091
    %v1093 = vpop.f32.mrb[0].mxu0
    %v1094 = vpop.f32.mrb[0].mxu0
    %1095 = vdwg.mxu0
    %v1096 = vxor.u32 %v1049, 2147483648
    %v1097 = vxor.u32 %v1051, 2147483648
    %v1098 = vxor.u32 %v1090, 2147483648
    %v1099 = vmul.f32 %v1096, 1.442695
    %v1100 = vpow.pop %v1099
    %v1101 = vmul.f32 %v1097, 1.442695
    %v1102 = vpow.pop %v1101
    %v1103 = vmul.f32 %v1098, 1.442695
    %v1104 = vpow.pop %v1103
    %v1105 = vadd.f32 %v1100, 1.0
    %v1106 = vadd.f32 %v1102, 1.0
    %v1107 = vadd.f32 %v1104, 1.0
    %v1108 = vrcp.pop %v1105
    %v1109 = vmul.f32 1.0, %v1108
    %v1110 = vrcp.pop %v1106
    %v1111 = vmul.f32 1.0, %v1110
    %v1112 = vrcp.pop %v1107
    %v1113 = vmul.f32 1.0, %v1112
    %v1114 = vtanh.pop %v1092
    %v1115 = vmul.f32 %v1111, %v987
    %v1116 = vmul.f32 %v1109, %v1114
    %v1117 = vadd.f32 %v1115, %v1116
    %v1118 = vtanh.pop %v1117
    %v1119 = vmul.f32 %v1113, %v1118
    %v1120 = vpack.c.bf16 %v1119, %v1119
    %s1121 = scalar_lea.vmem %s0, 7
    %v1122 = vld [vmem:[%s1121] ss:$8 sm:$0xf]
    %v1124 = vlaneseq
    %v1125 = vshrl.u32 %v1124, 7
    %v1126 = vsub.s32 0, %v1125
    %v1127 = vrot.slane %v1122, %v1126
    %v1128 = vlaneseq
    %v1129 = vshrl.u32 %v1128, 7
    %v1130 = vsub.s32 1, %v1129
    %v1131 = vrot.slane %v1122, %v1130
    %v1132 = vlaneseq
    %v1133 = vshrl.u32 %v1132, 7
    %v1134 = vsub.s32 2, %v1133
    %v1135 = vrot.slane %v1122, %v1134
    %v1136 = vlaneseq
    %v1137 = vshrl.u32 %v1136, 7
    %v1138 = vsub.s32 3, %v1137
    %v1139 = vrot.slane %v1122, %v1138
    %1144 = vmatprep.subr.bf16.mxu0 %v150
    %1145 = vmatpush1.bf16.msra.mxu0 %v149
    %1146 = vmatprep.subr.bf16.mxu0 %v154
    %1147 = vmatpush1.bf16.msra.mxu0 %v153
    %1148 = vmatprep.subr.bf16.mxu0 %v158
    %1149 = vmatpush1.bf16.msra.mxu0 %v157
    %1150 = vmatprep.subr.bf16.mxu0 %v162
    %1151 = vmatpush1.bf16.msra.mxu0 %v161
    %1152 = vmatprep.subr.bf16.mxu0 %v166
    %1153 = vmatpush1.bf16.msra.mxu0 %v165
    %1154 = vmatprep.subr.bf16.mxu0 %v170
    %1155 = vmatpush1.bf16.msra.mxu0 %v169
    %1156 = vmatprep.subr.bf16.mxu0 %v174
    %1157 = vmatpush1.bf16.msra.mxu0 %v173
    %1158 = vmatprep.subr.bf16.mxu0 %v178
    %1159 = vmatpush1.bf16.msra.mxu0 %v177
    %1160 = vmatprep.subr.bf16.mxu0 0
    %1161 = vmatpush1.bf16.msra.mxu0 0
    %1162 = vmatprep.subr.bf16.mxu0 0
    %1163 = vmatpush1.bf16.msra.mxu0 0
    %1164 = vmatprep.subr.bf16.mxu0 0
    %1165 = vmatpush1.bf16.msra.mxu0 0
    %1166 = vmatprep.subr.bf16.mxu0 0
    %1167 = vmatpush1.bf16.msra.mxu0 0
    %1168 = vmatprep.subr.bf16.mxu0 0
    %1169 = vmatpush1.bf16.msra.mxu0 0
    %1170 = vmatprep.subr.bf16.mxu0 0
    %1171 = vmatpush1.bf16.msra.mxu0 0
    %1172 = vmatprep.subr.bf16.mxu0 0
    %1173 = vmatpush1.bf16.msra.mxu0 0
    %1174 = vmatprep.subr.bf16.mxu0 0
    %1175 = vmatpush1.bf16.msra.mxu0 0
    %1176 = vmatprep.mubr.bf16.mxu0 0
    %1177 = vmatmul.mubr.bf16.gmra.mrb[0].mxu0 %v1120
    %v1178 = vpop.f32.mrb[0].mxu0
    %v1179 = vadd.f32 %v1127, %v1178
    %v1180 = vpop.f32.mrb[0].mxu0
    %v1181 = vadd.f32 %v1131, %v1180
    %v1182 = vpop.f32.mrb[0].mxu0
    %v1183 = vpop.f32.mrb[0].mxu0
    %1184 = vdwg.mxu0
    %1185 = vmatprep.subr.bf16.mxu0 %v152
    %1186 = vmatpush1.bf16.msra.mxu0 %v151
    %1187 = vmatprep.subr.bf16.mxu0 %v156
    %1188 = vmatpush1.bf16.msra.mxu0 %v155
    %1189 = vmatprep.subr.bf16.mxu0 %v160
    %1190 = vmatpush1.bf16.msra.mxu0 %v159
    %1191 = vmatprep.subr.bf16.mxu0 %v164
    %1192 = vmatpush1.bf16.msra.mxu0 %v163
    %1193 = vmatprep.subr.bf16.mxu0 %v168
    %1194 = vmatpush1.bf16.msra.mxu0 %v167
    %1195 = vmatprep.subr.bf16.mxu0 %v172
    %1196 = vmatpush1.bf16.msra.mxu0 %v171
    %1197 = vmatprep.subr.bf16.mxu0 %v176
    %1198 = vmatpush1.bf16.msra.mxu0 %v175
    %1199 = vmatprep.subr.bf16.mxu0 %v180
    %1200 = vmatpush1.bf16.msra.mxu0 %v179
    %1201 = vmatprep.subr.bf16.mxu0 0
    %1202 = vmatpush1.bf16.msra.mxu0 0
    %1203 = vmatprep.subr.bf16.mxu0 0
    %1204 = vmatpush1.bf16.msra.mxu0 0
    %1205 = vmatprep.subr.bf16.mxu0 0
    %1206 = vmatpush1.bf16.msra.mxu0 0
    %1207 = vmatprep.subr.bf16.mxu0 0
    %1208 = vmatpush1.bf16.msra.mxu0 0
    %1209 = vmatprep.subr.bf16.mxu0 0
    %1210 = vmatpush1.bf16.msra.mxu0 0
    %1211 = vmatprep.subr.bf16.mxu0 0
    %1212 = vmatpush1.bf16.msra.mxu0 0
    %1213 = vmatprep.subr.bf16.mxu0 0
    %1214 = vmatpush1.bf16.msra.mxu0 0
    %1215 = vmatprep.subr.bf16.mxu0 0
    %1216 = vmatpush1.bf16.msra.mxu0 0
    %1217 = vmatprep.mubr.bf16.mxu0 0
    %1218 = vmatmul.mubr.bf16.gmra.mrb[0].mxu0 %v1120
    %v1219 = vpop.f32.mrb[0].mxu0
    %v1220 = vadd.f32 %v1135, %v1219
    %v1221 = vpop.f32.mrb[0].mxu0
    %v1222 = vadd.f32 %v1139, %v1221
    %v1223 = vpop.f32.mrb[0].mxu0
    %v1224 = vpop.f32.mrb[0].mxu0
    %1225 = vdwg.mxu0
    %v1226 = vxor.u32 %v1179, 2147483648
    %v1227 = vxor.u32 %v1181, 2147483648
    %v1228 = vxor.u32 %v1220, 2147483648
    %v1229 = vmul.f32 %v1226, 1.442695
    %v1230 = vpow.pop %v1229
    %v1231 = vmul.f32 %v1227, 1.442695
    %v1232 = vpow.pop %v1231
    %v1233 = vmul.f32 %v1228, 1.442695
    %v1234 = vpow.pop %v1233
    %v1235 = vadd.f32 %v1230, 1.0
    %v1236 = vadd.f32 %v1232, 1.0
    %v1237 = vadd.f32 %v1234, 1.0
    %v1238 = vrcp.pop %v1235
    %v1239 = vmul.f32 1.0, %v1238
    %v1240 = vrcp.pop %v1236
    %v1241 = vmul.f32 1.0, %v1240
    %v1242 = vrcp.pop %v1237
    %v1243 = vmul.f32 1.0, %v1242
    %v1244 = vtanh.pop %v1222
    %v1245 = vmul.f32 %v1241, %v1117
    %v1246 = vmul.f32 %v1239, %v1244
    %v1247 = vadd.f32 %v1245, %v1246
    %v1248 = vtanh.pop %v1247
    %v1249 = vmul.f32 %v1243, %v1248
    %v1250 = vld [vmem:[%s2] sm:$0x1]
    %v1251 = vmul.f32 %v1249, %v1250
    %vm1252 = vcmask 1040384
    %v1253 = vsel %vm1252, %v1251, 0.0
    %1254 = vadd.xlane.f32.xlu0 %v1253
    %v1255 = vpop.xlane.xlu0 %1254
    %s1256 = sld [smem:[#allocation2]]
    %v1257 = vstv %s1256
    %v1258 = vadd.f32 %v1255, %v1257
    %vm1259 = vcmask 0
    %1260 = vst.msk [vmem:[#allocation3] sm:$0x1] %vm1259, %v1258
    // Predicated region
    $region18: #{lstm_forward.1} parent=1 // pred_check
      _
    $region19: #{lstm_forward.1} parent=1 // pred_check_branch
      %1262 = sbr.rel (0) target = $region21
    $region20: #{lstm_forward.1} parent=1 // pred_region
      %s1264 = ssub.s32 16, 16
      %1265 = vsyncadd [#allocation4], %s1264
      %s1267 = sshll.u32 [#allocation3], 4
      %s1268 = int_to_ptr.vmem [resolvable:$true] %s1267
      %1270 = dma.vmem_to_hbm [thread:$0]  %s1268, 16, %s4, [#allocation4]
    $region21: #{lstm_forward.1} parent=1 // pred_fallthru
      _
    // Predicated region
    $region22: #{lstm_forward.1} parent=1 // pred_check
      _
    $region23: #{lstm_forward.1} parent=1 // pred_check_branch
      %1272 = sbr.rel (0) target = $region25
    $region24: #{lstm_forward.1} parent=1 // pred_region
      %1273 = dma.done [#allocation4], 16
    $region25: #{lstm_forward.1} parent=1 // pred_fallthru
      _
    %1274 = vsyncpa [#allocation4], 1

</llo_original>
